<compile_context>
chip_gen: v7x
topology: tpu7x:2x2x1
jax: 0.10.0
libtpu: 0.0.40
codegen_flags: <defaults>
</compile_context>

<pallas_src>
import functools

import jax
import jax.numpy as jnp
from jax.experimental import pallas as pl
from jax.experimental.pallas import tpu as pltpu

GN_EPS = 1e-5  # cfg.GROUP_NORM.EPSILON


def _round_up(x, m):
    return (x + m - 1) // m * m


def _mlp_gn_kernel(x_ref, w1_ref, b1_ref, g1_ref, be1_ref,
                   w2_ref, b2_ref, g2_ref, be2_ref,
                   pd_ref, pu_ref, o_ref, acc_ref):
    """K-tiled fc1 accumulation + (GN -> ReLU -> fc2 -> GN -> ReLU) epilogue."""
    k = pl.program_id(1)

    @pl.when(k == 0)
    def _():
        acc_ref[...] = jnp.zeros_like(acc_ref)

    # fc1 partial product for this K tile (bf16 operands, f32 accumulation).
    acc_ref[...] += jnp.dot(x_ref[...], w1_ref[...],
                            preferred_element_type=jnp.float32)

    @pl.when(k == pl.num_programs(1) - 1)
    def _():
        pd = pd_ref[...]   # [H, G] block-diagonal group-average (down)
        pu = pu_ref[...]   # [G, H] broadcast-back (up)

        def group_norm_relu(z, g_row, be_row):
            # Per-(row, group) stats via two small matmuls; single-pass var.
            mu_g = jnp.dot(z, pd, preferred_element_type=jnp.float32)
            ex2_g = jnp.dot(z * z, pd, preferred_element_type=jnp.float32)
            mu = jnp.dot(mu_g, pu, preferred_element_type=jnp.float32)
            ex2 = jnp.dot(ex2_g, pu, preferred_element_type=jnp.float32)
            var = ex2 - mu * mu
            inv = jax.lax.rsqrt(var + GN_EPS)            # EUP rsqrt
            return jnp.maximum((z - mu) * (inv * g_row) + be_row, 0.0)

        # ---- GN1 + ReLU on the completed fc1 accumulator ----
        z1 = acc_ref[...] + b1_ref[...]
        h1 = group_norm_relu(z1, g1_ref[...], be1_ref[...])

        # ---- fc2 + GN2 + ReLU ----
        z2 = jnp.dot(h1.astype(w2_ref.dtype), w2_ref[...],
                     preferred_element_type=jnp.float32) + b2_ref[...]
        o_ref[...] = group_norm_relu(
            z2, g2_ref[...], be2_ref[...]).astype(o_ref.dtype)


@functools.partial(
    jax.jit, static_argnames=("num_groups", "tile_n", "tile_k", "matmul_dtype"))
def roi_2mlp_head_gn_forward(x_pooled, params, num_groups, *,
                             tile_n=256, tile_k=1024,
                             matmul_dtype=jnp.bfloat16):
    """x_pooled: [N, C, R, R] (NCHW, as produced by ROIAlign in the torch code)."""
    n = x_pooled.shape[0]
    x_flat = x_pooled.reshape(n, -1).astype(jnp.float32)  # x.view(batch_size, -1)
    d_in = x_flat.shape[1]

    w1, b1, g1, be1, w2, b2, g2, be2 = params
    hidden = w1.shape[1]
    assert hidden % num_groups == 0
    gs = hidden // num_groups

    # Effective tiles: sublane-aligned (16, safe for bf16) on N, lane-aligned
    # (128) on K, capped by the padded array extents.
    tn = min(tile_n, _round_up(n, 16))
    tk = min(tile_k, _round_up(d_in, 128))
    n_pad = _round_up(n, tn)
    k_pad = _round_up(d_in, tk)

    # Zero-pad ROI rows and the fc1 contraction dim (zero x cols x zero w1
    # rows contribute nothing to the accumulator).
    x_p = jnp.pad(x_flat, ((0, n_pad - n), (0, k_pad - d_in))).astype(matmul_dtype)
    w1_p = jnp.pad(w1, ((0, k_pad - d_in), (0, 0))).astype(matmul_dtype)
    w2_c = w2.astype(matmul_dtype)

    # Factorized group-averaging matrices:  mean = (z @ P_down) @ P_up.
    ch = jnp.arange(hidden)
    gid = jnp.arange(num_groups)
    p_down = ((ch[:, None] // gs) == gid[None, :]).astype(jnp.float32) / float(gs)
    p_up = ((ch[None, :] // gs) == gid[:, None]).astype(jnp.float32)

    row = lambda v: v.reshape(1, hidden).astype(jnp.float32)

    grid = (n_pad // tn, k_pad // tk)

    def rep(shp):  # grid-invariant operand (same block every step)
        return pl.BlockSpec(shp, lambda i, k: tuple(0 for _ in shp))

    out = pl.pallas_call(
        _mlp_gn_kernel,
        out_shape=jax.ShapeDtypeStruct((n_pad, hidden), jnp.float32),
        grid=grid,
        in_specs=[
            pl.BlockSpec((tn, tk), lambda i, k: (i, k)),      # x tile
            pl.BlockSpec((tk, hidden), lambda i, k: (k, 0)),  # w1 K-slab
            rep((1, hidden)), rep((1, hidden)), rep((1, hidden)),   # b1, g1, be1
            rep((hidden, hidden)),                                   # w2
            rep((1, hidden)), rep((1, hidden)), rep((1, hidden)),   # b2, g2, be2
            rep((hidden, num_groups)),                               # P_down
            rep((num_groups, hidden)),                               # P_up
        ],
        out_specs=pl.BlockSpec((tn, hidden), lambda i, k: (i, 0)),
        scratch_shapes=[pltpu.VMEM((tn, hidden), jnp.float32)],
        compiler_params=pltpu.CompilerParams(
            dimension_semantics=("parallel", "arbitrary"),
            vmem_limit_bytes=64 * 1024 * 1024),
    )(x_p, w1_p, row(b1), row(g1), row(be1),
      w2_c, row(b2), row(g2), row(be2), p_down, p_up)

    return out[:n]


def init_params(key, dim_in, roi_size, hidden_dim):
    """Synthetic init mirroring XavierFill(weight), 0 bias, GN gamma=1/beta=0."""
    d_in = dim_in * roi_size * roi_size
    k1, k2 = jax.random.split(key, 2)

    def xavier(k, fan_in, fan_out):
        s = (3.0 / fan_in) ** 0.5  # Caffe2 XavierFill: U(-sqrt(3/fan_in), +)
        return jax.random.uniform(k, (fan_in, fan_out), jnp.float32, -s, s)

    w1 = xavier(k1, d_in, hidden_dim)
    b1 = jnp.zeros((hidden_dim,), jnp.float32)
    g1 = jnp.ones((hidden_dim,), jnp.float32)
    be1 = jnp.zeros((hidden_dim,), jnp.float32)
    w2 = xavier(k2, hidden_dim, hidden_dim)
    b2 = jnp.zeros((hidden_dim,), jnp.float32)
    g2 = jnp.ones((hidden_dim,), jnp.float32)
    be2 = jnp.zeros((hidden_dim,), jnp.float32)
    return (w1, b1, g1, be1, w2, b2, g2, be2)


def reference_forward(x_pooled, params, num_groups, matmul_dtype=jnp.float32):
    """Pure-JAX reference.  matmul_dtype=bf16 mirrors the kernel's MXU casts."""
    w1, b1, g1, be1, w2, b2, g2, be2 = params
    n = x_pooled.shape[0]
    x = x_pooled.reshape(n, -1).astype(jnp.float32)

    def dot(a, b):
        return jnp.dot(a.astype(matmul_dtype), b.astype(matmul_dtype),
                       preferred_element_type=jnp.float32)

    def gn(z, gamma, beta):
        h = z.shape[1]
        zg = z.reshape(n, num_groups, h // num_groups)
        mu = zg.mean(-1, keepdims=True)
        var = ((zg - mu) ** 2).mean(-1, keepdims=True)
        zn = (zg - mu) / jnp.sqrt(var + GN_EPS)
        return zn.reshape(n, h) * gamma[None, :] + beta[None, :]

    h1 = jax.nn.relu(gn(dot(x, w1) + b1, g1, be1))
    h2 = jax.nn.relu(gn(dot(h1, w2) + b2, g2, be2))
    return h2


if __name__ == "__main__":
    # Small synthetic config: 32 ROIs, dim_in=4, ROI_XFORM_RESOLUTION=8,
    # MLP_HEAD_DIM=32, GroupNorm groups=4 (8 channels per group).
    # tile_n=16 / tile_k=128 exercise both grid axes (2x2 grid).
    N, DIM_IN, ROI, HIDDEN, GROUPS = 32, 4, 8, 32, 4

    key = jax.random.PRNGKey(0)
    kx, kp = jax.random.split(key)
    x_pooled = jax.random.normal(kx, (N, DIM_IN, ROI, ROI), jnp.float32)
    params = init_params(kp, DIM_IN, ROI, HIDDEN)

    out = roi_2mlp_head_gn_forward(x_pooled, params, num_groups=GROUPS,
                                   tile_n=16, tile_k=128)
    out = jax.block_until_ready(out)
    assert out.shape == (N, HIDDEN)

    ref_bf16 = reference_forward(x_pooled, params, GROUPS,
                                 matmul_dtype=jnp.bfloat16)
    ref_f32 = reference_forward(x_pooled, params, GROUPS,
                                matmul_dtype=jnp.float32)
    assert jnp.allclose(out, ref_bf16, atol=3e-2, rtol=3e-2), \
        "mismatch vs bf16-matched reference"
    assert jnp.allclose(out, ref_f32, atol=1.5e-1, rtol=1.5e-1), \
        "mismatch vs f32 reference"

    print("KERNEL_OK")
</pallas_src>

<mosaic_0001>
module attributes {stable_mosaic.version = 11 : i64} {
  func.func @_mlp_gn_kernel(%arg0: i32, %arg1: i32, %arg2: memref<16x128xbf16, #tpu.memory_space<vmem>>, %arg3: memref<128x32xbf16, #tpu.memory_space<vmem>>, %arg4: memref<1x32xf32, #tpu.memory_space<vmem>>, %arg5: memref<1x32xf32, #tpu.memory_space<vmem>>, %arg6: memref<1x32xf32, #tpu.memory_space<vmem>>, %arg7: memref<32x32xbf16, #tpu.memory_space<vmem>>, %arg8: memref<1x32xf32, #tpu.memory_space<vmem>>, %arg9: memref<1x32xf32, #tpu.memory_space<vmem>>, %arg10: memref<1x32xf32, #tpu.memory_space<vmem>>, %arg11: memref<32x4xf32, #tpu.memory_space<vmem>>, %arg12: memref<4x32xf32, #tpu.memory_space<vmem>>, %arg13: memref<16x32xf32, #tpu.memory_space<vmem>>, %arg14: memref<16x32xf32, #tpu.memory_space<vmem>>) attributes {dimension_semantics = [#tpu.dimension_semantics<parallel>, #tpu.dimension_semantics<arbitrary>], iteration_bounds = array<i64: 2, 2>, scalar_prefetch = 0 : i64, scratch_operands = 1 : i64, tpu.core_type = #tpu.core_type<tc>, window_params = [{transform_indices = @transform_0, window_bounds = array<i64: 16, 128>}, {transform_indices = @transform_1, window_bounds = array<i64: 128, 32>}, {pipeline_mode = #tpu.pipeline_mode<synchronous>, transform_indices = @transform_2, window_bounds = array<i64: 1, 32>}, {pipeline_mode = #tpu.pipeline_mode<synchronous>, transform_indices = @transform_3, window_bounds = array<i64: 1, 32>}, {pipeline_mode = #tpu.pipeline_mode<synchronous>, transform_indices = @transform_4, window_bounds = array<i64: 1, 32>}, {pipeline_mode = #tpu.pipeline_mode<synchronous>, transform_indices = @transform_5, window_bounds = array<i64: 32, 32>}, {pipeline_mode = #tpu.pipeline_mode<synchronous>, transform_indices = @transform_6, window_bounds = array<i64: 1, 32>}, {pipeline_mode = #tpu.pipeline_mode<synchronous>, transform_indices = @transform_7, window_bounds = array<i64: 1, 32>}, {pipeline_mode = #tpu.pipeline_mode<synchronous>, transform_indices = @transform_8, window_bounds = array<i64: 1, 32>}, {pipeline_mode = #tpu.pipeline_mode<synchronous>, transform_indices = @transform_9, window_bounds = array<i64: 32, 4>}, {pipeline_mode = #tpu.pipeline_mode<synchronous>, transform_indices = @transform_10, window_bounds = array<i64: 4, 32>}, {transform_indices = @transform_11, window_bounds = array<i64: 16, 32>}]} {
    %c0_i32 = arith.constant 0 : i32
    %0 = arith.cmpi eq, %arg1, %c0_i32 : i32
    %1 = arith.extui %0 : i1 to i32
    %c0_i32_0 = arith.constant 0 : i32
    %2 = arith.cmpi ne, %1, %c0_i32_0 : i32
    scf.if %2 {
      %cst_9 = arith.constant 0.000000e+00 : f32
      %12 = vector.broadcast %cst_9 : f32 to vector<16x32xf32>
      %c0_10 = arith.constant 0 : index
      %c0_11 = arith.constant 0 : index
      %13 = vector.load %arg14[%c0_10, %c0_11] : memref<16x32xf32, #tpu.memory_space<vmem>>, vector<16x32xf32>
      tpu.vector_store %arg14[%c0_10, %c0_11], %12 {strides = array<i32>} : memref<16x32xf32, #tpu.memory_space<vmem>>, vector<16x32xf32>,
    } else {
    }
    %c0 = arith.constant 0 : index
    %c0_1 = arith.constant 0 : index
    %3 = vector.load %arg14[%c0, %c0_1] : memref<16x32xf32, #tpu.memory_space<vmem>>, vector<16x32xf32>
    %c0_2 = arith.constant 0 : index
    %c0_3 = arith.constant 0 : index
    %4 = vector.load %arg2[%c0_2, %c0_3] : memref<16x128xbf16, #tpu.memory_space<vmem>>, vector<16x128xbf16>
    %c0_4 = arith.constant 0 : index
    %c0_5 = arith.constant 0 : index
    %5 = vector.load %arg3[%c0_4, %c0_5] : memref<128x32xbf16, #tpu.memory_space<vmem>>, vector<128x32xbf16>
    %cst = arith.constant dense<0.000000e+00> : vector<16x32xf32>
    %6 = tpu.matmul %4, %5, %cst {dimension_numbers = #tpu.dot_dimension_numbers<[1], [0], [0], [1], [0, 0, 1, 1], [], []>} : vector<16x128xbf16>, vector<128x32xbf16>, vector<16x32xf32> -> vector<16x32xf32>
    %7 = arith.addf %3, %6 : vector<16x32xf32>
    %c0_6 = arith.constant 0 : index
    %c0_7 = arith.constant 0 : index
    %8 = vector.load %arg14[%c0_6, %c0_7] : memref<16x32xf32, #tpu.memory_space<vmem>>, vector<16x32xf32>
    tpu.vector_store %arg14[%c0_6, %c0_7], %7 {strides = array<i32>} : memref<16x32xf32, #tpu.memory_space<vmem>>, vector<16x32xf32>,
    %c1_i32 = arith.constant 1 : i32
    %9 = arith.cmpi eq, %arg1, %c1_i32 : i32
    %10 = arith.extui %9 : i1 to i32
    %c0_i32_8 = arith.constant 0 : i32
    %11 = arith.cmpi ne, %10, %c0_i32_8 : i32
    scf.if %11 {
      %c0_9 = arith.constant 0 : index
      %c0_10 = arith.constant 0 : index
      %12 = vector.load %arg11[%c0_9, %c0_10] : memref<32x4xf32, #tpu.memory_space<vmem>>, vector<32x4xf32>
      %c0_11 = arith.constant 0 : index
      %c0_12 = arith.constant 0 : index
      %13 = vector.load %arg12[%c0_11, %c0_12] : memref<4x32xf32, #tpu.memory_space<vmem>>, vector<4x32xf32>
      %c0_13 = arith.constant 0 : index
      %c0_14 = arith.constant 0 : index
      %14 = vector.load %arg14[%c0_13, %c0_14] : memref<16x32xf32, #tpu.memory_space<vmem>>, vector<16x32xf32>
      %c0_15 = arith.constant 0 : index
      %c0_16 = arith.constant 0 : index
      %15 = vector.load %arg4[%c0_15, %c0_16] : memref<1x32xf32, #tpu.memory_space<vmem>>, vector<1x32xf32>
      %16 = vector.broadcast %15 : vector<1x32xf32> to vector<16x32xf32>
      %17 = arith.addf %14, %16 : vector<16x32xf32>
      %c0_17 = arith.constant 0 : index
      %c0_18 = arith.constant 0 : index
      %18 = vector.load %arg5[%c0_17, %c0_18] : memref<1x32xf32, #tpu.memory_space<vmem>>, vector<1x32xf32>
      %c0_19 = arith.constant 0 : index
      %c0_20 = arith.constant 0 : index
      %19 = vector.load %arg6[%c0_19, %c0_20] : memref<1x32xf32, #tpu.memory_space<vmem>>, vector<1x32xf32>
      %cst_21 = arith.constant dense<0.000000e+00> : vector<16x4xf32>
      %20 = tpu.matmul %17, %12, %cst_21 {dimension_numbers = #tpu.dot_dimension_numbers<[1], [0], [0], [1], [0, 0, 1, 1], [], []>} : vector<16x32xf32>, vector<32x4xf32>, vector<16x4xf32> -> vector<16x4xf32>
      %21 = arith.mulf %17, %17 : vector<16x32xf32>
      %cst_22 = arith.constant dense<0.000000e+00> : vector<16x4xf32>
      %22 = tpu.matmul %21, %12, %cst_22 {dimension_numbers = #tpu.dot_dimension_numbers<[1], [0], [0], [1], [0, 0, 1, 1], [], []>} : vector<16x32xf32>, vector<32x4xf32>, vector<16x4xf32> -> vector<16x4xf32>
      %cst_23 = arith.constant dense<0.000000e+00> : vector<16x32xf32>
      %23 = tpu.matmul %20, %13, %cst_23 {dimension_numbers = #tpu.dot_dimension_numbers<[1], [0], [0], [1], [0, 0, 1, 1], [], []>} : vector<16x4xf32>, vector<4x32xf32>, vector<16x32xf32> -> vector<16x32xf32>
      %cst_24 = arith.constant dense<0.000000e+00> : vector<16x32xf32>
      %24 = tpu.matmul %22, %13, %cst_24 {dimension_numbers = #tpu.dot_dimension_numbers<[1], [0], [0], [1], [0, 0, 1, 1], [], []>} : vector<16x4xf32>, vector<4x32xf32>, vector<16x32xf32> -> vector<16x32xf32>
      %25 = arith.mulf %23, %23 : vector<16x32xf32>
      %26 = arith.subf %24, %25 : vector<16x32xf32>
      %cst_25 = arith.constant 9.99999974E-6 : f32
      %27 = vector.broadcast %cst_25 : f32 to vector<16x32xf32>
      %28 = arith.addf %26, %27 : vector<16x32xf32>
      %29 = math.rsqrt %28 : vector<16x32xf32>
      %30 = arith.subf %17, %23 : vector<16x32xf32>
      %31 = vector.broadcast %18 : vector<1x32xf32> to vector<16x32xf32>
      %32 = arith.mulf %29, %31 : vector<16x32xf32>
      %33 = arith.mulf %30, %32 : vector<16x32xf32>
      %34 = vector.broadcast %19 : vector<1x32xf32> to vector<16x32xf32>
      %35 = arith.addf %33, %34 : vector<16x32xf32>
      %cst_26 = arith.constant 0.000000e+00 : f32
      %36 = vector.broadcast %cst_26 : f32 to vector<16x32xf32>
      %37 = arith.maximumf %35, %36 : vector<16x32xf32>
      %38 = arith.truncf %37 : vector<16x32xf32> to vector<16x32xbf16>
      %c0_27 = arith.constant 0 : index
      %c0_28 = arith.constant 0 : index
      %39 = vector.load %arg7[%c0_27, %c0_28] : memref<32x32xbf16, #tpu.memory_space<vmem>>, vector<32x32xbf16>
      %cst_29 = arith.constant dense<0.000000e+00> : vector<16x32xf32>
      %40 = tpu.matmul %38, %39, %cst_29 {dimension_numbers = #tpu.dot_dimension_numbers<[1], [0], [0], [1], [0, 0, 1, 1], [], []>} : vector<16x32xbf16>, vector<32x32xbf16>, vector<16x32xf32> -> vector<16x32xf32>
      %c0_30 = arith.constant 0 : index
      %c0_31 = arith.constant 0 : index
      %41 = vector.load %arg8[%c0_30, %c0_31] : memref<1x32xf32, #tpu.memory_space<vmem>>, vector<1x32xf32>
      %42 = vector.broadcast %41 : vector<1x32xf32> to vector<16x32xf32>
      %43 = arith.addf %40, %42 : vector<16x32xf32>
      %c0_32 = arith.constant 0 : index
      %c0_33 = arith.constant 0 : index
      %44 = vector.load %arg9[%c0_32, %c0_33] : memref<1x32xf32, #tpu.memory_space<vmem>>, vector<1x32xf32>
      %c0_34 = arith.constant 0 : index
      %c0_35 = arith.constant 0 : index
      %45 = vector.load %arg10[%c0_34, %c0_35] : memref<1x32xf32, #tpu.memory_space<vmem>>, vector<1x32xf32>
      %cst_36 = arith.constant dense<0.000000e+00> : vector<16x4xf32>
      %46 = tpu.matmul %43, %12, %cst_36 {dimension_numbers = #tpu.dot_dimension_numbers<[1], [0], [0], [1], [0, 0, 1, 1], [], []>} : vector<16x32xf32>, vector<32x4xf32>, vector<16x4xf32> -> vector<16x4xf32>
      %47 = arith.mulf %43, %43 : vector<16x32xf32>
      %cst_37 = arith.constant dense<0.000000e+00> : vector<16x4xf32>
      %48 = tpu.matmul %47, %12, %cst_37 {dimension_numbers = #tpu.dot_dimension_numbers<[1], [0], [0], [1], [0, 0, 1, 1], [], []>} : vector<16x32xf32>, vector<32x4xf32>, vector<16x4xf32> -> vector<16x4xf32>
      %cst_38 = arith.constant dense<0.000000e+00> : vector<16x32xf32>
      %49 = tpu.matmul %46, %13, %cst_38 {dimension_numbers = #tpu.dot_dimension_numbers<[1], [0], [0], [1], [0, 0, 1, 1], [], []>} : vector<16x4xf32>, vector<4x32xf32>, vector<16x32xf32> -> vector<16x32xf32>
      %cst_39 = arith.constant dense<0.000000e+00> : vector<16x32xf32>
      %50 = tpu.matmul %48, %13, %cst_39 {dimension_numbers = #tpu.dot_dimension_numbers<[1], [0], [0], [1], [0, 0, 1, 1], [], []>} : vector<16x4xf32>, vector<4x32xf32>, vector<16x32xf32> -> vector<16x32xf32>
      %51 = arith.mulf %49, %49 : vector<16x32xf32>
      %52 = arith.subf %50, %51 : vector<16x32xf32>
      %cst_40 = arith.constant 9.99999974E-6 : f32
      %53 = vector.broadcast %cst_40 : f32 to vector<16x32xf32>
      %54 = arith.addf %52, %53 : vector<16x32xf32>
      %55 = math.rsqrt %54 : vector<16x32xf32>
      %56 = arith.subf %43, %49 : vector<16x32xf32>
      %57 = vector.broadcast %44 : vector<1x32xf32> to vector<16x32xf32>
      %58 = arith.mulf %55, %57 : vector<16x32xf32>
      %59 = arith.mulf %56, %58 : vector<16x32xf32>
      %60 = vector.broadcast %45 : vector<1x32xf32> to vector<16x32xf32>
      %61 = arith.addf %59, %60 : vector<16x32xf32>
      %cst_41 = arith.constant 0.000000e+00 : f32
      %62 = vector.broadcast %cst_41 : f32 to vector<16x32xf32>
      %63 = arith.maximumf %61, %62 : vector<16x32xf32>
      %c0_42 = arith.constant 0 : index
      %c0_43 = arith.constant 0 : index
      %64 = vector.load %arg13[%c0_42, %c0_43] : memref<16x32xf32, #tpu.memory_space<vmem>>, vector<16x32xf32>
      tpu.vector_store %arg13[%c0_42, %c0_43], %63 {strides = array<i32>} : memref<16x32xf32, #tpu.memory_space<vmem>>, vector<16x32xf32>,
    } else {
    }
    return
  }
  func.func @transform_0(%arg0: i32, %arg1: i32) -> (i32, i32) {
    %c0_i32 = arith.constant 0 : i32
    return %arg0, %arg1 : i32, i32
  }
  func.func @transform_1(%arg0: i32, %arg1: i32) -> (i32, i32) {
    %c0_i32 = arith.constant 0 : i32
    %c0_i32_0 = arith.constant 0 : i32
    return %arg1, %c0_i32 : i32, i32
  }
  func.func @transform_2(%arg0: i32, %arg1: i32) -> (i32, i32) {
    %c0_i32 = arith.constant 0 : i32
    %c0_i32_0 = arith.constant 0 : i32
    %c0_i32_1 = arith.constant 0 : i32
    return %c0_i32, %c0_i32_0 : i32, i32
  }
  func.func @transform_3(%arg0: i32, %arg1: i32) -> (i32, i32) {
    %c0_i32 = arith.constant 0 : i32
    %c0_i32_0 = arith.constant 0 : i32
    %c0_i32_1 = arith.constant 0 : i32
    return %c0_i32, %c0_i32_0 : i32, i32
  }
  func.func @transform_4(%arg0: i32, %arg1: i32) -> (i32, i32) {
    %c0_i32 = arith.constant 0 : i32
    %c0_i32_0 = arith.constant 0 : i32
    %c0_i32_1 = arith.constant 0 : i32
    return %c0_i32, %c0_i32_0 : i32, i32
  }
  func.func @transform_5(%arg0: i32, %arg1: i32) -> (i32, i32) {
    %c0_i32 = arith.constant 0 : i32
    %c0_i32_0 = arith.constant 0 : i32
    %c0_i32_1 = arith.constant 0 : i32
    return %c0_i32, %c0_i32_0 : i32, i32
  }
  func.func @transform_6(%arg0: i32, %arg1: i32) -> (i32, i32) {
    %c0_i32 = arith.constant 0 : i32
    %c0_i32_0 = arith.constant 0 : i32
    %c0_i32_1 = arith.constant 0 : i32
    return %c0_i32, %c0_i32_0 : i32, i32
  }
  func.func @transform_7(%arg0: i32, %arg1: i32) -> (i32, i32) {
    %c0_i32 = arith.constant 0 : i32
    %c0_i32_0 = arith.constant 0 : i32
    %c0_i32_1 = arith.constant 0 : i32
    return %c0_i32, %c0_i32_0 : i32, i32
  }
  func.func @transform_8(%arg0: i32, %arg1: i32) -> (i32, i32) {
    %c0_i32 = arith.constant 0 : i32
    %c0_i32_0 = arith.constant 0 : i32
    %c0_i32_1 = arith.constant 0 : i32
    return %c0_i32, %c0_i32_0 : i32, i32
  }
  func.func @transform_9(%arg0: i32, %arg1: i32) -> (i32, i32) {
    %c0_i32 = arith.constant 0 : i32
    %c0_i32_0 = arith.constant 0 : i32
    %c0_i32_1 = arith.constant 0 : i32
    return %c0_i32, %c0_i32_0 : i32, i32
  }
  func.func @transform_10(%arg0: i32, %arg1: i32) -> (i32, i32) {
    %c0_i32 = arith.constant 0 : i32
    %c0_i32_0 = arith.constant 0 : i32
    %c0_i32_1 = arith.constant 0 : i32
    return %c0_i32, %c0_i32_0 : i32, i32
  }
  func.func @transform_11(%arg0: i32, %arg1: i32) -> (i32, i32) {
    %c0_i32 = arith.constant 0 : i32
    %c0_i32_0 = arith.constant 0 : i32
    return %arg0, %c0_i32 : i32, i32
  }
}

</mosaic_0001>

<llo_original>
// kernel: roi_2mlp_head_gn_forward.1
$region0: #{roi_2mlp_head_gn_forward.1}
  #allocation0 [shape = 'u32[]', space=smem, size = 0x4, offset = 0x4, fixed_abs, tag = 'smem constant byte address 0x4 - core index']
  #allocation1 [shape = 'u32[144,128]{1,0:T(1,128)}', space=vmem, size = 0x12000, scoped, tag = 'internal scratch']
  #allocation2 [shape = 'f32[16,32]{1,0:T(8,128)}', space=vmem, size = 0x2000, scoped, tag = 'scratch operand']
  %s0 = inlined_call_operand.hbm [shape: bf16[32,256], index: 0, kind: input, shape index: {}]
  %s1 = inlined_call_operand.hbm [shape: bf16[256,32], index: 1, kind: input, shape index: {}]
  %s2 = inlined_call_operand.hbm [shape: f32[1,32], index: 2, kind: input, shape index: {}]
  %s3 = inlined_call_operand.hbm [shape: f32[1,32], index: 3, kind: input, shape index: {}]
  %s4 = inlined_call_operand.hbm [shape: f32[1,32], index: 4, kind: input, shape index: {}]
  %s5 = inlined_call_operand.hbm [shape: bf16[32,32], index: 5, kind: input, shape index: {}]
  %s6 = inlined_call_operand.hbm [shape: f32[1,32], index: 6, kind: input, shape index: {}]
  %s7 = inlined_call_operand.hbm [shape: f32[1,32], index: 7, kind: input, shape index: {}]
  %s8 = inlined_call_operand.hbm [shape: f32[1,32], index: 8, kind: input, shape index: {}]
  %s9 = inlined_call_operand.hbm [shape: f32[32,4], index: 9, kind: input, shape index: {}]
  %s10 = inlined_call_operand.hbm [shape: f32[4,32], index: 10, kind: input, shape index: {}]
  %s11 = inlined_call_operand.hbm [shape: f32[32,32], index: 11, kind: output, shape index: {}]
  %s12 = sld [smem:[#allocation0]]
  $region129: #{roi_2mlp_head_gn_forward.1} parent=0
    _
  %s14 = ssub.s32 1, %s12
  %s15 = scalar_select 0, %s14, %s12
  $region1: #{roi_2mlp_head_gn_forward.1} parent=0
    #allocation3 [shape = 'u8[8192]{0}', space=vmem, size = 0x2000, scoped, tag = 'input window, operand 0']
    #allocation4 [shape = 's32[2]{0}', space=sflag, size = 0x8, scoped, tag = 'scoped memory for roi_2mlp_head_gn_forward.1']
    #allocation5 [shape = 's32[2]{0}', space=sflag, size = 0x8, scoped, tag = 'scoped memory for roi_2mlp_head_gn_forward.1']
    #allocation6 [shape = 'u8[65536]{0}', space=vmem, size = 0x10000, scoped, tag = 'input window, operand 1']
    #allocation7 [shape = 's32[2]{0}', space=sflag, size = 0x8, scoped, tag = 'scoped memory for roi_2mlp_head_gn_forward.1']
    #allocation8 [shape = 'u8[512]{0}', space=vmem, size = 0x400, scoped, tag = 'input window, operand 2, single buffered']
    #allocation9 [shape = 'u8[512]{0}', space=vmem, size = 0x400, scoped, tag = 'input window, operand 3, single buffered']
    #allocation10 [shape = 's32[1]{0}', space=sflag, size = 0x4, scoped, tag = 'scoped memory for roi_2mlp_head_gn_forward.1']
    #allocation11 [shape = 'u8[512]{0}', space=vmem, size = 0x400, scoped, tag = 'input window, operand 4, single buffered']
    #allocation12 [shape = 'u8[8192]{0}', space=vmem, size = 0x2000, scoped, tag = 'input window, operand 5, single buffered']
    #allocation13 [shape = 's32[1]{0}', space=sflag, size = 0x4, scoped, tag = 'scoped memory for roi_2mlp_head_gn_forward.1']
    #allocation14 [shape = 'u8[512]{0}', space=vmem, size = 0x400, scoped, tag = 'input window, operand 6, single buffered']
    #allocation15 [shape = 'u8[512]{0}', space=vmem, size = 0x400, scoped, tag = 'input window, operand 7, single buffered']
    #allocation16 [shape = 's32[1]{0}', space=sflag, size = 0x4, scoped, tag = 'scoped memory for roi_2mlp_head_gn_forward.1']
    #allocation17 [shape = 'u8[512]{0}', space=vmem, size = 0x400, scoped, tag = 'input window, operand 8, single buffered']
    #allocation18 [shape = 'u8[16384]{0}', space=vmem, size = 0x4000, scoped, tag = 'input window, operand 9, single buffered']
    #allocation19 [shape = 's32[1]{0}', space=sflag, size = 0x4, scoped, tag = 'scoped memory for roi_2mlp_head_gn_forward.1']
    #allocation20 [shape = 'u8[2048]{0}', space=vmem, size = 0x800, scoped, tag = 'input window, operand 10, single buffered']
    #allocation21 [shape = 'u8[16384]{0}', space=vmem, size = 0x4000, scoped, tag = 'output window, operand 0']
    %16 = vsyncpa [#allocation4], 0
    %s17 = scalar_lea.sflag [#allocation4], 1
    %18 = vsyncpa %s17, 0
    %19 = vsyncpa [#allocation7], 0
    %s20 = scalar_lea.sflag [#allocation7], 1
    %21 = vsyncpa %s20, 0
    %22 = vsyncpa [#allocation10], 0
    %23 = vsyncpa [#allocation13], 0
    %24 = vsyncpa [#allocation16], 0
    %25 = vsyncpa [#allocation19], 0
    %26 = vsyncpa [#allocation5], 0
    %s27 = scalar_lea.sflag [#allocation5], 1
    %28 = vsyncpa %s27, 0
    loop: start=0, step=1, limit=6
    $region2: #{roi_2mlp_head_gn_forward.1} parent=1 // loop_pre_header
      _
    $region3: #{roi_2mlp_head_gn_forward.1} parent=1 // loop_header
      %s30 = sphi 0, %s34
      %p31 = scmp.ge.s32.totalorder %s30, 6
      %s37 = sphi 0, %s49
      %s38 = sphi 0, %s45
      %s39 = sphi 0, %s37
      %s40 = sphi 0, %s38
      %s41 = sphi 0, %s39
      %s42 = sphi 0, %s40
      %s54 = sphi 0, %s56
      %s57 = sphi 0, %s54
      %s58 = sphi 0, %s57
      %s74 = sphi 0, %s58
      %s80 = sphi 0, %s82
      %s83 = sphi 0, %s80
      %s84 = sphi 0, %s83
      %s100 = sphi 0, %s84
      %s104 = sphi 0, %s104
      %s106 = sphi 0, %s104
      %s107 = sphi 0, %s106
      %s121 = sphi 0, %s107
      %s125 = sphi 0, %s125
      %s127 = sphi 0, %s125
      %s128 = sphi 0, %s127
      %s142 = sphi 0, %s128
      %s146 = sphi 0, %s146
      %s148 = sphi 0, %s146
      %s149 = sphi 0, %s148
      %s163 = sphi 0, %s149
      %s167 = sphi 0, %s167
      %s169 = sphi 0, %s167
      %s170 = sphi 0, %s169
      %s184 = sphi 0, %s170
      %s188 = sphi 0, %s188
      %s190 = sphi 0, %s188
      %s191 = sphi 0, %s190
      %s205 = sphi 0, %s191
      %s209 = sphi 0, %s209
      %s211 = sphi 0, %s209
      %s212 = sphi 0, %s211
      %s226 = sphi 0, %s212
      %s230 = sphi 0, %s230
      %s232 = sphi 0, %s230
      %s233 = sphi 0, %s232
      %s247 = sphi 0, %s233
      %s251 = sphi 0, %s251
      %s253 = sphi 0, %s251
      %s254 = sphi 0, %s253
      %s268 = sphi 0, %s254
      %s272 = sphi 0, %s272
      %s274 = sphi 0, %s272
      %s275 = sphi 0, %s274
      %s289 = sphi 0, %s275
      %s295 = sphi 0, %s297
      %s298 = sphi 0, %s295
      %s299 = sphi 0, %s298
      %s315 = sphi 0, %s299
    $region4: #{roi_2mlp_head_gn_forward.1} parent=1 // loop_header_branch
      %33 = sbr.rel (%p31) target = $region8
    $region5: #{roi_2mlp_head_gn_forward.1} parent=1 // loop_body
      %s35 = ssub.s32 %s30, 1
      %s36 = ssub.s32 %s30, 2
      %s43 = sadd.s32 1, %s38
      %p44 = scmp.ge.s32.totalorder %s43, 2
      %s45 = scalar_select %p44, 0, %s43
      %s46 = sadd.s32 1, %s37
      %s47 = scalar_select %p44, %s46, %s37
      %p48 = scmp.ge.s32.totalorder %s47, 2
      %s49 = scalar_select %p48, 0, %s47
      %s50 = ssub.s32 %s37, %s49
      %s51 = ssub.s32 %s38, %s45
      %s52 = sor.u32 %s50, %s51
      %p53 = scmp.eq.s32.totalorder %s52, 0
      %s55 = sadd.s32 %s54, 1
      %s56 = scalar_select %p53, %s54, %s55
      %p59 = pneg %p53
      %p60 = scmp.eq.s32.totalorder %s30, 3
      %p61 = por %p59, %p60
      %p62 = scmp.ne.s32.totalorder %s54, %s57
      %p63 = scmp.eq.s32.totalorder %s30, 0
      %p64 = por %p62, %p63
      %p65 = scmp.ne.s32.totalorder %s54, %s57
      %p66 = scmp.eq.s32.totalorder %s35, 3
      %p67 = por %p65, %p66
      %p68 = scmp.ne.s32.totalorder %s57, %s58
      %p69 = scmp.eq.s32.totalorder %s35, 0
      %p70 = por %p68, %p69
      %p71 = scmp.ne.s32.totalorder %s57, %s58
      %p72 = scmp.eq.s32.totalorder %s36, 3
      %p73 = por %p71, %p72
      %p75 = scmp.ne.s32.totalorder %s58, %s74
      %p76 = scmp.eq.s32.totalorder %s36, 0
      %p77 = por %p75, %p76
      %s78 = ssub.s32 %s38, %s45
      %p79 = scmp.eq.s32.totalorder %s78, 0
      %s81 = sadd.s32 %s80, 1
      %s82 = scalar_select %p79, %s80, %s81
      %p85 = pneg %p79
      %p86 = scmp.eq.s32.totalorder %s30, 3
      %p87 = por %p85, %p86
      %p88 = scmp.ne.s32.totalorder %s80, %s83
      %p89 = scmp.eq.s32.totalorder %s30, 0
      %p90 = por %p88, %p89
      %p91 = scmp.ne.s32.totalorder %s80, %s83
      %p92 = scmp.eq.s32.totalorder %s35, 3
      %p93 = por %p91, %p92
      %p94 = scmp.ne.s32.totalorder %s83, %s84
      %p95 = scmp.eq.s32.totalorder %s35, 0
      %p96 = por %p94, %p95
      %p97 = scmp.ne.s32.totalorder %s83, %s84
      %p98 = scmp.eq.s32.totalorder %s36, 3
      %p99 = por %p97, %p98
      %p101 = scmp.ne.s32.totalorder %s84, %s100
      %p102 = scmp.eq.s32.totalorder %s36, 0
      %p103 = por %p101, %p102
      %s105 = sadd.s32 %s104, 1
      %p108 = scmp.eq.s32.totalorder %s30, 3
      %p109 = scmp.ne.s32.totalorder %s104, %s106
      %p110 = scmp.eq.s32.totalorder %s30, 0
      %p111 = por %p109, %p110
      %p112 = scmp.ne.s32.totalorder %s104, %s106
      %p113 = scmp.eq.s32.totalorder %s35, 3
      %p114 = por %p112, %p113
      %p115 = scmp.ne.s32.totalorder %s106, %s107
      %p116 = scmp.eq.s32.totalorder %s35, 0
      %p117 = por %p115, %p116
      %p118 = scmp.ne.s32.totalorder %s106, %s107
      %p119 = scmp.eq.s32.totalorder %s36, 3
      %p120 = por %p118, %p119
      %p122 = scmp.ne.s32.totalorder %s107, %s121
      %p123 = scmp.eq.s32.totalorder %s36, 0
      %p124 = por %p122, %p123
      %s126 = sadd.s32 %s125, 1
      %p129 = scmp.eq.s32.totalorder %s30, 3
      %p130 = scmp.ne.s32.totalorder %s125, %s127
      %p131 = scmp.eq.s32.totalorder %s30, 0
      %p132 = por %p130, %p131
      %p133 = scmp.ne.s32.totalorder %s125, %s127
      %p134 = scmp.eq.s32.totalorder %s35, 3
      %p135 = por %p133, %p134
      %p136 = scmp.ne.s32.totalorder %s127, %s128
      %p137 = scmp.eq.s32.totalorder %s35, 0
      %p138 = por %p136, %p137
      %p139 = scmp.ne.s32.totalorder %s127, %s128
      %p140 = scmp.eq.s32.totalorder %s36, 3
      %p141 = por %p139, %p140
      %p143 = scmp.ne.s32.totalorder %s128, %s142
      %p144 = scmp.eq.s32.totalorder %s36, 0
      %p145 = por %p143, %p144
      %s147 = sadd.s32 %s146, 1
      %p150 = scmp.eq.s32.totalorder %s30, 3
      %p151 = scmp.ne.s32.totalorder %s146, %s148
      %p152 = scmp.eq.s32.totalorder %s30, 0
      %p153 = por %p151, %p152
      %p154 = scmp.ne.s32.totalorder %s146, %s148
      %p155 = scmp.eq.s32.totalorder %s35, 3
      %p156 = por %p154, %p155
      %p157 = scmp.ne.s32.totalorder %s148, %s149
      %p158 = scmp.eq.s32.totalorder %s35, 0
      %p159 = por %p157, %p158
      %p160 = scmp.ne.s32.totalorder %s148, %s149
      %p161 = scmp.eq.s32.totalorder %s36, 3
      %p162 = por %p160, %p161
      %p164 = scmp.ne.s32.totalorder %s149, %s163
      %p165 = scmp.eq.s32.totalorder %s36, 0
      %p166 = por %p164, %p165
      %s168 = sadd.s32 %s167, 1
      %p171 = scmp.eq.s32.totalorder %s30, 3
      %p172 = scmp.ne.s32.totalorder %s167, %s169
      %p173 = scmp.eq.s32.totalorder %s30, 0
      %p174 = por %p172, %p173
      %p175 = scmp.ne.s32.totalorder %s167, %s169
      %p176 = scmp.eq.s32.totalorder %s35, 3
      %p177 = por %p175, %p176
      %p178 = scmp.ne.s32.totalorder %s169, %s170
      %p179 = scmp.eq.s32.totalorder %s35, 0
      %p180 = por %p178, %p179
      %p181 = scmp.ne.s32.totalorder %s169, %s170
      %p182 = scmp.eq.s32.totalorder %s36, 3
      %p183 = por %p181, %p182
      %p185 = scmp.ne.s32.totalorder %s170, %s184
      %p186 = scmp.eq.s32.totalorder %s36, 0
      %p187 = por %p185, %p186
      %s189 = sadd.s32 %s188, 1
      %p192 = scmp.eq.s32.totalorder %s30, 3
      %p193 = scmp.ne.s32.totalorder %s188, %s190
      %p194 = scmp.eq.s32.totalorder %s30, 0
      %p195 = por %p193, %p194
      %p196 = scmp.ne.s32.totalorder %s188, %s190
      %p197 = scmp.eq.s32.totalorder %s35, 3
      %p198 = por %p196, %p197
      %p199 = scmp.ne.s32.totalorder %s190, %s191
      %p200 = scmp.eq.s32.totalorder %s35, 0
      %p201 = por %p199, %p200
      %p202 = scmp.ne.s32.totalorder %s190, %s191
      %p203 = scmp.eq.s32.totalorder %s36, 3
      %p204 = por %p202, %p203
      %p206 = scmp.ne.s32.totalorder %s191, %s205
      %p207 = scmp.eq.s32.totalorder %s36, 0
      %p208 = por %p206, %p207
      %s210 = sadd.s32 %s209, 1
      %p213 = scmp.eq.s32.totalorder %s30, 3
      %p214 = scmp.ne.s32.totalorder %s209, %s211
      %p215 = scmp.eq.s32.totalorder %s30, 0
      %p216 = por %p214, %p215
      %p217 = scmp.ne.s32.totalorder %s209, %s211
      %p218 = scmp.eq.s32.totalorder %s35, 3
      %p219 = por %p217, %p218
      %p220 = scmp.ne.s32.totalorder %s211, %s212
      %p221 = scmp.eq.s32.totalorder %s35, 0
      %p222 = por %p220, %p221
      %p223 = scmp.ne.s32.totalorder %s211, %s212
      %p224 = scmp.eq.s32.totalorder %s36, 3
      %p225 = por %p223, %p224
      %p227 = scmp.ne.s32.totalorder %s212, %s226
      %p228 = scmp.eq.s32.totalorder %s36, 0
      %p229 = por %p227, %p228
      %s231 = sadd.s32 %s230, 1
      %p234 = scmp.eq.s32.totalorder %s30, 3
      %p235 = scmp.ne.s32.totalorder %s230, %s232
      %p236 = scmp.eq.s32.totalorder %s30, 0
      %p237 = por %p235, %p236
      %p238 = scmp.ne.s32.totalorder %s230, %s232
      %p239 = scmp.eq.s32.totalorder %s35, 3
      %p240 = por %p238, %p239
      %p241 = scmp.ne.s32.totalorder %s232, %s233
      %p242 = scmp.eq.s32.totalorder %s35, 0
      %p243 = por %p241, %p242
      %p244 = scmp.ne.s32.totalorder %s232, %s233
      %p245 = scmp.eq.s32.totalorder %s36, 3
      %p246 = por %p244, %p245
      %p248 = scmp.ne.s32.totalorder %s233, %s247
      %p249 = scmp.eq.s32.totalorder %s36, 0
      %p250 = por %p248, %p249
      %s252 = sadd.s32 %s251, 1
      %p255 = scmp.eq.s32.totalorder %s30, 3
      %p256 = scmp.ne.s32.totalorder %s251, %s253
      %p257 = scmp.eq.s32.totalorder %s30, 0
      %p258 = por %p256, %p257
      %p259 = scmp.ne.s32.totalorder %s251, %s253
      %p260 = scmp.eq.s32.totalorder %s35, 3
      %p261 = por %p259, %p260
      %p262 = scmp.ne.s32.totalorder %s253, %s254
      %p263 = scmp.eq.s32.totalorder %s35, 0
      %p264 = por %p262, %p263
      %p265 = scmp.ne.s32.totalorder %s253, %s254
      %p266 = scmp.eq.s32.totalorder %s36, 3
      %p267 = por %p265, %p266
      %p269 = scmp.ne.s32.totalorder %s254, %s268
      %p270 = scmp.eq.s32.totalorder %s36, 0
      %p271 = por %p269, %p270
      %s273 = sadd.s32 %s272, 1
      %p276 = scmp.eq.s32.totalorder %s30, 3
      %p277 = scmp.ne.s32.totalorder %s272, %s274
      %p278 = scmp.eq.s32.totalorder %s30, 0
      %p279 = por %p277, %p278
      %p280 = scmp.ne.s32.totalorder %s272, %s274
      %p281 = scmp.eq.s32.totalorder %s35, 3
      %p282 = por %p280, %p281
      %p283 = scmp.ne.s32.totalorder %s274, %s275
      %p284 = scmp.eq.s32.totalorder %s35, 0
      %p285 = por %p283, %p284
      %p286 = scmp.ne.s32.totalorder %s274, %s275
      %p287 = scmp.eq.s32.totalorder %s36, 3
      %p288 = por %p286, %p287
      %p290 = scmp.ne.s32.totalorder %s275, %s289
      %p291 = scmp.eq.s32.totalorder %s36, 0
      %p292 = por %p290, %p291
      %s293 = ssub.s32 %s37, %s49
      %p294 = scmp.eq.s32.totalorder %s293, 0
      %s296 = sadd.s32 %s295, 1
      %s297 = scalar_select %p294, %s295, %s296
      %p300 = pneg %p294
      %p301 = scmp.eq.s32.totalorder %s30, 3
      %p302 = por %p300, %p301
      %p303 = scmp.ne.s32.totalorder %s295, %s298
      %p304 = scmp.eq.s32.totalorder %s30, 0
      %p305 = por %p303, %p304
      %p306 = scmp.ne.s32.totalorder %s295, %s298
      %p307 = scmp.eq.s32.totalorder %s35, 3
      %p308 = por %p306, %p307
      %p309 = scmp.ne.s32.totalorder %s298, %s299
      %p310 = scmp.eq.s32.totalorder %s35, 0
      %p311 = por %p309, %p310
      %p312 = scmp.ne.s32.totalorder %s298, %s299
      %p313 = scmp.eq.s32.totalorder %s36, 3
      %p314 = por %p312, %p313
      %p316 = scmp.ne.s32.totalorder %s299, %s315
      %p317 = scmp.eq.s32.totalorder %s36, 0
      %p318 = por %p316, %p317
      %p319 = scmp.le.s32.totalorder 1, %s30
      %p320 = scmp.lt.s32.totalorder %s30, 5
      %p321 = pnand %p319, %p320
      %p322 = pneg %p321
      // Predicated region
      $region9: #{roi_2mlp_head_gn_forward.1} parent=5 // pred_check
        _
      $region10: #{roi_2mlp_head_gn_forward.1} parent=5 // pred_check_branch
        %324 = sbr.rel (%p321) target = $region12
      $region11: #{roi_2mlp_head_gn_forward.1} parent=5 // pred_region
        %s325 = ssub.s32 %s30, 1
        // Predicated region
        $region13: #{roi_2mlp_head_gn_forward.1} parent=11 // pred_check
          %p326 = pneg %p117
        $region14: #{roi_2mlp_head_gn_forward.1} parent=11 // pred_check_branch
          %328 = sbr.rel (%p326) target = $region16
        $region15: #{roi_2mlp_head_gn_forward.1} parent=11 // pred_region
          %s330 = ssub.s32 16, 16
          %331 = vsyncadd [#allocation7], %s330
          %s333 = sshll.u32 [#allocation8], 4
          %s334 = int_to_ptr.vmem [resolvable:$true] %s333
          %336 = dma.hbm_to_vmem [thread:$0]  %s2, 16, %s334, [#allocation7]
        $region16: #{roi_2mlp_head_gn_forward.1} parent=11 // pred_fallthru
          _
        // Predicated region
        $region17: #{roi_2mlp_head_gn_forward.1} parent=11 // pred_check
          %p337 = pneg %p138
        $region18: #{roi_2mlp_head_gn_forward.1} parent=11 // pred_check_branch
          %339 = sbr.rel (%p337) target = $region20
        $region19: #{roi_2mlp_head_gn_forward.1} parent=11 // pred_region
          %s341 = ssub.s32 16, 16
          %342 = vsyncadd [#allocation10], %s341
          %s344 = sshll.u32 [#allocation9], 4
          %s345 = int_to_ptr.vmem [resolvable:$true] %s344
          %347 = dma.hbm_to_vmem [thread:$0]  %s3, 16, %s345, [#allocation10]
        $region20: #{roi_2mlp_head_gn_forward.1} parent=11 // pred_fallthru
          _
        // Predicated region
        $region21: #{roi_2mlp_head_gn_forward.1} parent=11 // pred_check
          %p348 = pneg %p159
        $region22: #{roi_2mlp_head_gn_forward.1} parent=11 // pred_check_branch
          %350 = sbr.rel (%p348) target = $region24
        $region23: #{roi_2mlp_head_gn_forward.1} parent=11 // pred_region
          %s352 = ssub.s32 16, 16
          %353 = vsyncadd [#allocation10], %s352
          %s355 = sshll.u32 [#allocation11], 4
          %s356 = int_to_ptr.vmem [resolvable:$true] %s355
          %358 = dma.hbm_to_vmem [thread:$0]  %s4, 16, %s356, [#allocation10]
        $region24: #{roi_2mlp_head_gn_forward.1} parent=11 // pred_fallthru
          _
        // Predicated region
        $region25: #{roi_2mlp_head_gn_forward.1} parent=11 // pred_check
          %p359 = pneg %p180
        $region26: #{roi_2mlp_head_gn_forward.1} parent=11 // pred_check_branch
          %361 = sbr.rel (%p359) target = $region28
        $region27: #{roi_2mlp_head_gn_forward.1} parent=11 // pred_region
          %s363 = ssub.s32 256, 256
          %364 = vsyncadd [#allocation13], %s363
          %s365 = sshll.u32 [#allocation12], 4
          %s366 = int_to_ptr.vmem [resolvable:$true] %s365
          %371 = dma.hbm_to_vmem [thread:$0]  %s5, 256, %s366, [#allocation13], 64, 64, 4
        $region28: #{roi_2mlp_head_gn_forward.1} parent=11 // pred_fallthru
          _
        // Predicated region
        $region29: #{roi_2mlp_head_gn_forward.1} parent=11 // pred_check
          %p372 = pneg %p201
        $region30: #{roi_2mlp_head_gn_forward.1} parent=11 // pred_check_branch
          %374 = sbr.rel (%p372) target = $region32
        $region31: #{roi_2mlp_head_gn_forward.1} parent=11 // pred_region
          %s376 = ssub.s32 16, 16
          %377 = vsyncadd [#allocation13], %s376
          %s379 = sshll.u32 [#allocation14], 4
          %s380 = int_to_ptr.vmem [resolvable:$true] %s379
          %382 = dma.hbm_to_vmem [thread:$0]  %s6, 16, %s380, [#allocation13]
        $region32: #{roi_2mlp_head_gn_forward.1} parent=11 // pred_fallthru
          _
        // Predicated region
        $region33: #{roi_2mlp_head_gn_forward.1} parent=11 // pred_check
          %p383 = pneg %p222
        $region34: #{roi_2mlp_head_gn_forward.1} parent=11 // pred_check_branch
          %385 = sbr.rel (%p383) target = $region36
        $region35: #{roi_2mlp_head_gn_forward.1} parent=11 // pred_region
          %s387 = ssub.s32 16, 16
          %388 = vsyncadd [#allocation16], %s387
          %s390 = sshll.u32 [#allocation15], 4
          %s391 = int_to_ptr.vmem [resolvable:$true] %s390
          %393 = dma.hbm_to_vmem [thread:$0]  %s7, 16, %s391, [#allocation16]
        $region36: #{roi_2mlp_head_gn_forward.1} parent=11 // pred_fallthru
          _
        // Predicated region
        $region37: #{roi_2mlp_head_gn_forward.1} parent=11 // pred_check
          %p394 = pneg %p243
        $region38: #{roi_2mlp_head_gn_forward.1} parent=11 // pred_check_branch
          %396 = sbr.rel (%p394) target = $region40
        $region39: #{roi_2mlp_head_gn_forward.1} parent=11 // pred_region
          %s398 = ssub.s32 16, 16
          %399 = vsyncadd [#allocation16], %s398
          %s401 = sshll.u32 [#allocation17], 4
          %s402 = int_to_ptr.vmem [resolvable:$true] %s401
          %404 = dma.hbm_to_vmem [thread:$0]  %s8, 16, %s402, [#allocation16]
        $region40: #{roi_2mlp_head_gn_forward.1} parent=11 // pred_fallthru
          _
        // Predicated region
        $region41: #{roi_2mlp_head_gn_forward.1} parent=11 // pred_check
          %p405 = pneg %p264
        $region42: #{roi_2mlp_head_gn_forward.1} parent=11 // pred_check_branch
          %407 = sbr.rel (%p405) target = $region44
        $region43: #{roi_2mlp_head_gn_forward.1} parent=11 // pred_region
          %s409 = ssub.s32 512, 512
          %410 = vsyncadd [#allocation19], %s409
          %s411 = sshll.u32 [#allocation18], 4
          %s412 = int_to_ptr.vmem [resolvable:$true] %s411
          %417 = dma.hbm_to_vmem [thread:$0]  %s9, 512, %s412, [#allocation19], 128, 128, 8
        $region44: #{roi_2mlp_head_gn_forward.1} parent=11 // pred_fallthru
          _
        // Predicated region
        $region45: #{roi_2mlp_head_gn_forward.1} parent=11 // pred_check
          %p418 = pneg %p285
        $region46: #{roi_2mlp_head_gn_forward.1} parent=11 // pred_check_branch
          %420 = sbr.rel (%p418) target = $region48
        $region47: #{roi_2mlp_head_gn_forward.1} parent=11 // pred_region
          %s422 = ssub.s32 64, 64
          %423 = vsyncadd [#allocation19], %s422
          %s425 = sshll.u32 [#allocation20], 4
          %s426 = int_to_ptr.vmem [resolvable:$true] %s425
          %428 = dma.hbm_to_vmem [thread:$0]  %s10, 64, %s426, [#allocation19]
        $region48: #{roi_2mlp_head_gn_forward.1} parent=11 // pred_fallthru
          _
      $region12: #{roi_2mlp_head_gn_forward.1} parent=5 // pred_fallthru
        _
      %p429 = scmp.lt.s32.totalorder %s30, 4
      // Predicated region
      $region49: #{roi_2mlp_head_gn_forward.1} parent=5 // pred_check
        %p430 = pneg %p429
      $region50: #{roi_2mlp_head_gn_forward.1} parent=5 // pred_check_branch
        %432 = sbr.rel (%p430) target = $region52
      $region51: #{roi_2mlp_head_gn_forward.1} parent=5 // pred_region
        // Predicated region
        $region53: #{roi_2mlp_head_gn_forward.1} parent=51 // pred_check
          %p433 = pneg %p64
        $region54: #{roi_2mlp_head_gn_forward.1} parent=51 // pred_check_branch
          %435 = sbr.rel (%p433) target = $region56
        $region55: #{roi_2mlp_head_gn_forward.1} parent=51 // pred_region
          %s436 = sand.u32 %s54, 1
          %s437 = scalar_lea.sflag [#allocation4], %s436
          %s438 = sand.u32 %s54, 1
          %s439 = smul.addr %s438, 8
          %s440 = scalar_lea.vmem [#allocation3], %s439
          %s441 = smul.u32 2, %s37
          %s443 = ssub.s32 128, 128
          %444 = vsyncadd %s437, %s443
          %s445 = smul.addr %s441, 2
          %s446 = sadd.s32 %s38, %s445
          %s447 = smul.addr %s446, 64
          %s448 = scalar_lea.hbm %s0, %s447
          %s449 = sshll.u32 %s440, 4
          %s450 = int_to_ptr.vmem [resolvable:$true] %s449
          %455 = dma.hbm_to_vmem [thread:$0]  %s448, 128, %s450, %s437, 128, 64, 4
        $region56: #{roi_2mlp_head_gn_forward.1} parent=51 // pred_fallthru
          _
        // Predicated region
        $region57: #{roi_2mlp_head_gn_forward.1} parent=51 // pred_check
          %p456 = pneg %p90
        $region58: #{roi_2mlp_head_gn_forward.1} parent=51 // pred_check_branch
          %458 = sbr.rel (%p456) target = $region60
        $region59: #{roi_2mlp_head_gn_forward.1} parent=51 // pred_region
          %s459 = sand.u32 %s30, 1
          %s460 = scalar_lea.sflag [#allocation7], %s459
          %s461 = sand.u32 %s80, 1
          %s462 = smul.addr %s461, 64
          %s463 = scalar_lea.vmem [#allocation6], %s462
          %s464 = smul.u32 16, %s38
          %s466 = ssub.s32 1024, 1024
          %467 = vsyncadd %s460, %s466
          %s468 = smul.addr %s464, 64
          %s469 = scalar_lea.hbm %s1, %s468
          %s470 = sshll.u32 %s463, 4
          %s471 = int_to_ptr.vmem [resolvable:$true] %s470
          %476 = dma.hbm_to_vmem [thread:$0]  %s469, 1024, %s471, %s460, 64, 64, 4
        $region60: #{roi_2mlp_head_gn_forward.1} parent=51 // pred_fallthru
          _
      $region52: #{roi_2mlp_head_gn_forward.1} parent=5 // pred_fallthru
        _
      %p477 = scmp.le.s32.totalorder 1, %s30
      %p478 = scmp.lt.s32.totalorder %s30, 5
      %p479 = pnand %p477, %p478
      %p480 = pneg %p479
      // Predicated region
      $region61: #{roi_2mlp_head_gn_forward.1} parent=5 // pred_check
        _
      $region62: #{roi_2mlp_head_gn_forward.1} parent=5 // pred_check_branch
        %482 = sbr.rel (%p479) target = $region64
      $region63: #{roi_2mlp_head_gn_forward.1} parent=5 // pred_region
        %s483 = ssub.s32 %s30, 1
        %s484 = sand.u32 %s57, 1
        %s485 = scalar_lea.sflag [#allocation4], %s484
        %s486 = sand.u32 %s57, 1
        %s487 = smul.addr %s486, 8
        %s488 = scalar_lea.vmem [#allocation3], %s487
        // Predicated region
        $region65: #{roi_2mlp_head_gn_forward.1} parent=63 // pred_check
          %p489 = pneg %p70
        $region66: #{roi_2mlp_head_gn_forward.1} parent=63 // pred_check_branch
          %491 = sbr.rel (%p489) target = $region68
        $region67: #{roi_2mlp_head_gn_forward.1} parent=63 // pred_region
          %492 = dma.done %s485, 128
        $region68: #{roi_2mlp_head_gn_forward.1} parent=63 // pred_fallthru
          _
        %s493 = sand.u32 %s35, 1
        %s494 = scalar_lea.sflag [#allocation7], %s493
        %s495 = sand.u32 %s83, 1
        %s496 = smul.addr %s495, 64
        %s497 = scalar_lea.vmem [#allocation6], %s496
        // Predicated region
        $region69: #{roi_2mlp_head_gn_forward.1} parent=63 // pred_check
          %p498 = pneg %p96
        $region70: #{roi_2mlp_head_gn_forward.1} parent=63 // pred_check_branch
          %500 = sbr.rel (%p498) target = $region72
        $region71: #{roi_2mlp_head_gn_forward.1} parent=63 // pred_region
          %501 = dma.done %s494, 1024
        $region72: #{roi_2mlp_head_gn_forward.1} parent=63 // pred_fallthru
          _
        // Predicated region
        $region73: #{roi_2mlp_head_gn_forward.1} parent=63 // pred_check
          %p502 = pneg %p117
        $region74: #{roi_2mlp_head_gn_forward.1} parent=63 // pred_check_branch
          %504 = sbr.rel (%p502) target = $region76
        $region75: #{roi_2mlp_head_gn_forward.1} parent=63 // pred_region
          %505 = dma.done [#allocation7], 16
        $region76: #{roi_2mlp_head_gn_forward.1} parent=63 // pred_fallthru
          _
        // Predicated region
        $region77: #{roi_2mlp_head_gn_forward.1} parent=63 // pred_check
          %p506 = pneg %p138
        $region78: #{roi_2mlp_head_gn_forward.1} parent=63 // pred_check_branch
          %508 = sbr.rel (%p506) target = $region80
        $region79: #{roi_2mlp_head_gn_forward.1} parent=63 // pred_region
          %509 = dma.done [#allocation10], 16
        $region80: #{roi_2mlp_head_gn_forward.1} parent=63 // pred_fallthru
          _
        // Predicated region
        $region81: #{roi_2mlp_head_gn_forward.1} parent=63 // pred_check
          %p510 = pneg %p159
        $region82: #{roi_2mlp_head_gn_forward.1} parent=63 // pred_check_branch
          %512 = sbr.rel (%p510) target = $region84
        $region83: #{roi_2mlp_head_gn_forward.1} parent=63 // pred_region
          %513 = dma.done [#allocation10], 16
        $region84: #{roi_2mlp_head_gn_forward.1} parent=63 // pred_fallthru
          _
        // Predicated region
        $region85: #{roi_2mlp_head_gn_forward.1} parent=63 // pred_check
          %p514 = pneg %p180
        $region86: #{roi_2mlp_head_gn_forward.1} parent=63 // pred_check_branch
          %516 = sbr.rel (%p514) target = $region88
        $region87: #{roi_2mlp_head_gn_forward.1} parent=63 // pred_region
          %517 = dma.done [#allocation13], 256
        $region88: #{roi_2mlp_head_gn_forward.1} parent=63 // pred_fallthru
          _
        // Predicated region
        $region89: #{roi_2mlp_head_gn_forward.1} parent=63 // pred_check
          %p518 = pneg %p201
        $region90: #{roi_2mlp_head_gn_forward.1} parent=63 // pred_check_branch
          %520 = sbr.rel (%p518) target = $region92
        $region91: #{roi_2mlp_head_gn_forward.1} parent=63 // pred_region
          %521 = dma.done [#allocation13], 16
        $region92: #{roi_2mlp_head_gn_forward.1} parent=63 // pred_fallthru
          _
        // Predicated region
        $region93: #{roi_2mlp_head_gn_forward.1} parent=63 // pred_check
          %p522 = pneg %p222
        $region94: #{roi_2mlp_head_gn_forward.1} parent=63 // pred_check_branch
          %524 = sbr.rel (%p522) target = $region96
        $region95: #{roi_2mlp_head_gn_forward.1} parent=63 // pred_region
          %525 = dma.done [#allocation16], 16
        $region96: #{roi_2mlp_head_gn_forward.1} parent=63 // pred_fallthru
          _
        // Predicated region
        $region97: #{roi_2mlp_head_gn_forward.1} parent=63 // pred_check
          %p526 = pneg %p243
        $region98: #{roi_2mlp_head_gn_forward.1} parent=63 // pred_check_branch
          %528 = sbr.rel (%p526) target = $region100
        $region99: #{roi_2mlp_head_gn_forward.1} parent=63 // pred_region
          %529 = dma.done [#allocation16], 16
        $region100: #{roi_2mlp_head_gn_forward.1} parent=63 // pred_fallthru
          _
        // Predicated region
        $region101: #{roi_2mlp_head_gn_forward.1} parent=63 // pred_check
          %p530 = pneg %p264
        $region102: #{roi_2mlp_head_gn_forward.1} parent=63 // pred_check_branch
          %532 = sbr.rel (%p530) target = $region104
        $region103: #{roi_2mlp_head_gn_forward.1} parent=63 // pred_region
          %533 = dma.done [#allocation19], 512
        $region104: #{roi_2mlp_head_gn_forward.1} parent=63 // pred_fallthru
          _
        // Predicated region
        $region105: #{roi_2mlp_head_gn_forward.1} parent=63 // pred_check
          %p534 = pneg %p285
        $region106: #{roi_2mlp_head_gn_forward.1} parent=63 // pred_check_branch
          %536 = sbr.rel (%p534) target = $region108
        $region107: #{roi_2mlp_head_gn_forward.1} parent=63 // pred_region
          %537 = dma.done [#allocation19], 64
        $region108: #{roi_2mlp_head_gn_forward.1} parent=63 // pred_fallthru
          _
        %s538 = sand.u32 %s57, 1
        %s539 = scalar_lea.sflag [#allocation4], %s538
        %s540 = sand.u32 %s57, 1
        %s541 = smul.addr %s540, 8
        %s542 = scalar_lea.vmem [#allocation3], %s541
        %p543 = pneg %p70
        %p544 = pneg %p67
        %s545 = sand.u32 %s35, 1
        %s546 = scalar_lea.sflag [#allocation7], %s545
        %s547 = sand.u32 %s83, 1
        %s548 = smul.addr %s547, 64
        %s549 = scalar_lea.vmem [#allocation6], %s548
        %p550 = pneg %p96
        %p551 = pneg %p93
        %p552 = pneg %p117
        %p553 = pneg %p114
        %p554 = pneg %p138
        %p555 = pneg %p135
        %p556 = pneg %p159
        %p557 = pneg %p156
        %p558 = pneg %p180
        %p559 = pneg %p177
        %p560 = pneg %p201
        %p561 = pneg %p198
        %p562 = pneg %p222
        %p563 = pneg %p219
        %p564 = pneg %p243
        %p565 = pneg %p240
        %p566 = pneg %p264
        %p567 = pneg %p261
        %p568 = pneg %p285
        %p569 = pneg %p282
        %p570 = pneg %p311
        %p571 = pneg %p308
        %s572 = sand.u32 %s298, 1
        %s573 = scalar_lea.sflag [#allocation5], %s572
        %s574 = sand.u32 %s298, 1
        %s575 = smul.addr %s574, 16
        %s576 = scalar_lea.vmem [#allocation21], %s575
        %s577 = smul.u32 2, %s39
        %s578 = smul.u32 16, %s40
        %s579 = smul.u32 2, %s39
        %p581 = scmp.eq.s32.totalorder %s40, 0
        // Predicated region
        $region109: #{roi_2mlp_head_gn_forward.1} parent=63 // pred_check
          %p582 = pneg %p581
        $region110: #{roi_2mlp_head_gn_forward.1} parent=63 // pred_check_branch
          %584 = sbr.rel (%p582) target = $region112
        $region111: #{roi_2mlp_head_gn_forward.1} parent=63 // pred_region
          %vm585 = vcmask 261120
          %586 = vst.msk [vmem:[#allocation2] sm:$0xff] %vm585, 0.0
          %587 = vst.msk [vmem:[#allocation2 + $0x8] sm:$0xff] %vm585, 0.0
        $region112: #{roi_2mlp_head_gn_forward.1} parent=63 // pred_fallthru
          _
        %v588 = vld [vmem:[#allocation2] sm:$0xff]
        %v589 = vld [vmem:[#allocation2 + $0x8] sm:$0xff]
        %v590 = vld [vmem:[%s488] sm:$0xf]
        %v591 = vld [vmem:[%s488 + $0x4] sm:$0xf]
        %v592 = vld [vmem:[%s497] sm:$0xf]
        %v593 = vld [vmem:[%s497 + $0x4] sm:$0xf]
        %v594 = vld [vmem:[%s497 + $0x8] sm:$0xf]
        %v595 = vld [vmem:[%s497 + $0xc] sm:$0xf]
        %v596 = vld [vmem:[%s497 + $0x10] sm:$0xf]
        %v597 = vld [vmem:[%s497 + $0x14] sm:$0xf]
        %v598 = vld [vmem:[%s497 + $0x18] sm:$0xf]
        %v599 = vld [vmem:[%s497 + $0x1c] sm:$0xf]
        %v600 = vld [vmem:[%s497 + $0x20] sm:$0xf]
        %v601 = vld [vmem:[%s497 + $0x24] sm:$0xf]
        %v602 = vld [vmem:[%s497 + $0x28] sm:$0xf]
        %v603 = vld [vmem:[%s497 + $0x2c] sm:$0xf]
        %v604 = vld [vmem:[%s497 + $0x30] sm:$0xf]
        %v605 = vld [vmem:[%s497 + $0x34] sm:$0xf]
        %v606 = vld [vmem:[%s497 + $0x38] sm:$0xf]
        %v607 = vld [vmem:[%s497 + $0x3c] sm:$0xf]
        %v610 = vunpack.c.l.b16 %v590
        %v611 = vunpack.c.l.b16 %v591
        %v612 = vpack.c.b16 %v611, %v610
        %v630 = vunpack.c.l.b16 %v592
        %v631 = vunpack.c.l.b16 %v593
        %v632 = vunpack.c.l.b16 %v594
        %v633 = vunpack.c.l.b16 %v595
        %v634 = vunpack.c.l.b16 %v596
        %v635 = vunpack.c.l.b16 %v597
        %v636 = vunpack.c.l.b16 %v598
        %v637 = vunpack.c.l.b16 %v599
        %v638 = vunpack.c.l.b16 %v600
        %v639 = vunpack.c.l.b16 %v601
        %v640 = vunpack.c.l.b16 %v602
        %v641 = vunpack.c.l.b16 %v603
        %v642 = vunpack.c.l.b16 %v604
        %v643 = vunpack.c.l.b16 %v605
        %v644 = vunpack.c.l.b16 %v606
        %v645 = vunpack.c.l.b16 %v607
        %v646 = vpack.c.b16 %v631, %v630
        %v647 = vpack.c.b16 %v633, %v632
        %v648 = vpack.c.b16 %v635, %v634
        %v649 = vpack.c.b16 %v637, %v636
        %v650 = vpack.c.b16 %v639, %v638
        %v651 = vpack.c.b16 %v641, %v640
        %v652 = vpack.c.b16 %v643, %v642
        %v653 = vpack.c.b16 %v645, %v644
        %662 = vmatprep.subr.bf16.mxu0 0
        %663 = vmatpush1.bf16.msra.mxu0 %v646
        %664 = vmatprep.subr.bf16.mxu0 0
        %665 = vmatpush1.bf16.msra.mxu0 %v647
        %666 = vmatprep.subr.bf16.mxu0 0
        %667 = vmatpush1.bf16.msra.mxu0 %v648
        %668 = vmatprep.subr.bf16.mxu0 0
        %669 = vmatpush1.bf16.msra.mxu0 %v649
        %670 = vmatprep.subr.bf16.mxu0 0
        %671 = vmatpush1.bf16.msra.mxu0 %v650
        %672 = vmatprep.subr.bf16.mxu0 0
        %673 = vmatpush1.bf16.msra.mxu0 %v651
        %674 = vmatprep.subr.bf16.mxu0 0
        %675 = vmatpush1.bf16.msra.mxu0 %v652
        %676 = vmatprep.subr.bf16.mxu0 0
        %677 = vmatpush1.bf16.msra.mxu0 %v653
        %678 = vmatprep.subr.bf16.mxu0 0
        %679 = vmatpush1.bf16.msra.mxu0 0
        %680 = vmatprep.subr.bf16.mxu0 0
        %681 = vmatpush1.bf16.msra.mxu0 0
        %682 = vmatprep.subr.bf16.mxu0 0
        %683 = vmatpush1.bf16.msra.mxu0 0
        %684 = vmatprep.subr.bf16.mxu0 0
        %685 = vmatpush1.bf16.msra.mxu0 0
        %686 = vmatprep.subr.bf16.mxu0 0
        %687 = vmatpush1.bf16.msra.mxu0 0
        %688 = vmatprep.subr.bf16.mxu0 0
        %689 = vmatpush1.bf16.msra.mxu0 0
        %690 = vmatprep.subr.bf16.mxu0 0
        %691 = vmatpush1.bf16.msra.mxu0 0
        %692 = vmatprep.subr.bf16.mxu0 0
        %693 = vmatpush1.bf16.msra.mxu0 0
        %694 = vmatprep.mubr.bf16.mxu0 0
        %695 = vmatmul.mubr.bf16.gmra.mrb[0].mxu0 %v612
        %v696 = vpop.f32.mrb[0].mxu0
        %v697 = vadd.f32 0.0, %v696
        %v698 = vpop.f32.mrb[0].mxu0
        %v699 = vpop.f32.mrb[0].mxu0
        %v700 = vadd.f32 0.0, %v699
        %v701 = vpop.f32.mrb[0].mxu0
        %702 = vdwg.mxu0
        %v703 = vadd.f32 %v588, %v697
        %v704 = vadd.f32 %v589, %v700
        %vm705 = vcmask 261120
        %706 = vst.msk [vmem:[#allocation2] sm:$0xff] %vm705, %v703
        %707 = vst.msk [vmem:[#allocation2 + $0x8] sm:$0xff] %vm705, %v704
        %p708 = scmp.eq.s32.totalorder %s40, 1
        // Predicated region
        $region113: #{roi_2mlp_head_gn_forward.1} parent=63 // pred_check
          %p709 = pneg %p708
        $region114: #{roi_2mlp_head_gn_forward.1} parent=63 // pred_check_branch
          %711 = sbr.rel (%p709) target = $region116
        $region115: #{roi_2mlp_head_gn_forward.1} parent=63 // pred_region
          %v712 = vld [vmem:[#allocation18] sm:$0xff]
          %v713 = vld [vmem:[#allocation18 + $0x8] sm:$0xff]
          %v714 = vld [vmem:[#allocation18 + $0x10] sm:$0xff]
          %v715 = vld [vmem:[#allocation18 + $0x18] sm:$0xff]
          %v716 = vld [vmem:[#allocation20] sm:$0xf]
          %v717 = vld [vmem:[#allocation2] sm:$0xff]
          %v718 = vld [vmem:[#allocation2 + $0x8] sm:$0xff]
          %v719 = vld [vmem:[#allocation8] sm:$0x1]
          %v721 = vlaneseq
          %v722 = vshrl.u32 %v721, 7
          %v723 = vsub.s32 0, %v722
          %v724 = vrot.slane %v719, %v723
          %v726 = vadd.f32 %v717, %v724
          %v727 = vadd.f32 %v718, %v724
          %v728 = vld [vmem:[#allocation9] sm:$0x1]
          %v729 = vld [vmem:[#allocation11] sm:$0x1]
          %v731 = vsel %vm705, %v726, 0
          %v734 = vsel %vm705, %v727, 0
          %736 = vmatprep.subr.mxu0 0.0
          %737 = vmatpush1.msra.mxu0 %v712
          %738 = vmatprep.subr.mxu0 0.0
          %739 = vmatpush1.msra.mxu0 %v713
          %740 = vmatprep.subr.mxu0 0.0
          %741 = vmatpush1.msra.mxu0 %v714
          %742 = vmatprep.subr.mxu0 0.0
          %743 = vmatpush1.msra.mxu0 %v715
          %744 = vmatprep.subr.mxu0 0.0
          %745 = vmatpush1.msra.mxu0 0.0
          %746 = vmatprep.subr.mxu0 0.0
          %747 = vmatpush1.msra.mxu0 0.0
          %748 = vmatprep.subr.mxu0 0.0
          %749 = vmatpush1.msra.mxu0 0.0
          %750 = vmatprep.subr.mxu0 0.0
          %751 = vmatpush1.msra.mxu0 0.0
          %752 = vmatprep.subr.mxu0 0.0
          %753 = vmatpush1.msra.mxu0 0.0
          %754 = vmatprep.subr.mxu0 0.0
          %755 = vmatpush1.msra.mxu0 0.0
          %756 = vmatprep.subr.mxu0 0.0
          %757 = vmatpush1.msra.mxu0 0.0
          %758 = vmatprep.subr.mxu0 0.0
          %759 = vmatpush1.msra.mxu0 0.0
          %760 = vmatprep.subr.mxu0 0.0
          %761 = vmatpush1.msra.mxu0 0.0
          %762 = vmatprep.subr.mxu0 0.0
          %763 = vmatpush1.msra.mxu0 0.0
          %764 = vmatprep.subr.mxu0 0.0
          %765 = vmatpush1.msra.mxu0 0.0
          %766 = vmatprep.subr.mxu0 0.0
          %767 = vmatpush1.msra.mxu0 0.0
          %768 = vmatprep.subr.mxu0 0.0
          %769 = vmatpush1.msra.mxu0 0.0
          %770 = vmatprep.subr.mxu0 0.0
          %771 = vmatpush1.msra.mxu0 0.0
          %772 = vmatprep.subr.mxu0 0.0
          %773 = vmatpush1.msra.mxu0 0.0
          %774 = vmatprep.subr.mxu0 0.0
          %775 = vmatpush1.msra.mxu0 0.0
          %776 = vmatprep.subr.mxu0 0.0
          %777 = vmatpush1.msra.mxu0 0.0
          %778 = vmatprep.subr.mxu0 0.0
          %779 = vmatpush1.msra.mxu0 0.0
          %780 = vmatprep.subr.mxu0 0.0
          %781 = vmatpush1.msra.mxu0 0.0
          %782 = vmatprep.subr.mxu0 0.0
          %783 = vmatpush1.msra.mxu0 0.0
          %784 = vmatprep.subr.mxu0 0.0
          %785 = vmatpush1.msra.mxu0 0.0
          %786 = vmatprep.subr.mxu0 0.0
          %787 = vmatpush1.msra.mxu0 0.0
          %788 = vmatprep.subr.mxu0 0.0
          %789 = vmatpush1.msra.mxu0 0.0
          %790 = vmatprep.subr.mxu0 0.0
          %791 = vmatpush1.msra.mxu0 0.0
          %792 = vmatprep.subr.mxu0 0.0
          %793 = vmatpush1.msra.mxu0 0.0
          %794 = vmatprep.subr.mxu0 0.0
          %795 = vmatpush1.msra.mxu0 0.0
          %796 = vmatprep.subr.mxu0 0.0
          %797 = vmatpush1.msra.mxu0 0.0
          %798 = vmatprep.subr.mxu0 0.0
          %799 = vmatpush1.msra.mxu0 0.0
          %800 = vmatprep.mubr.f32.mxu0 0.0
          %801 = vmatmul.mubr.f32.gmra.mrb[0].mxu0 %v731
          %v802 = vpop.f32.mrb[0].mxu0
          %v803 = vadd.f32 0.0, %v802
          %v804 = vpop.f32.mrb[0].mxu0
          %805 = vmatprep.mubr.f32.mxu0 0.0
          %806 = vmatmul.mubr.f32.gmra.mrb[0].mxu0 %v734
          %v807 = vpop.f32.mrb[0].mxu0
          %v808 = vadd.f32 0.0, %v807
          %v809 = vpop.f32.mrb[0].mxu0
          %810 = vdwg.mxu0
          %v811 = vmul.f32 %v726, %v726
          %v812 = vmul.f32 %v727, %v727
          %v814 = vsel %vm705, %v811, 0
          %v817 = vsel %vm705, %v812, 0
          %819 = vmatprep.subr.mxu0 0.0
          %820 = vmatpush1.msra.mxu0 %v712
          %821 = vmatprep.subr.mxu0 0.0
          %822 = vmatpush1.msra.mxu0 %v713
          %823 = vmatprep.subr.mxu0 0.0
          %824 = vmatpush1.msra.mxu0 %v714
          %825 = vmatprep.subr.mxu0 0.0
          %826 = vmatpush1.msra.mxu0 %v715
          %827 = vmatprep.subr.mxu0 0.0
          %828 = vmatpush1.msra.mxu0 0.0
          %829 = vmatprep.subr.mxu0 0.0
          %830 = vmatpush1.msra.mxu0 0.0
          %831 = vmatprep.subr.mxu0 0.0
          %832 = vmatpush1.msra.mxu0 0.0
          %833 = vmatprep.subr.mxu0 0.0
          %834 = vmatpush1.msra.mxu0 0.0
          %835 = vmatprep.subr.mxu0 0.0
          %836 = vmatpush1.msra.mxu0 0.0
          %837 = vmatprep.subr.mxu0 0.0
          %838 = vmatpush1.msra.mxu0 0.0
          %839 = vmatprep.subr.mxu0 0.0
          %840 = vmatpush1.msra.mxu0 0.0
          %841 = vmatprep.subr.mxu0 0.0
          %842 = vmatpush1.msra.mxu0 0.0
          %843 = vmatprep.subr.mxu0 0.0
          %844 = vmatpush1.msra.mxu0 0.0
          %845 = vmatprep.subr.mxu0 0.0
          %846 = vmatpush1.msra.mxu0 0.0
          %847 = vmatprep.subr.mxu0 0.0
          %848 = vmatpush1.msra.mxu0 0.0
          %849 = vmatprep.subr.mxu0 0.0
          %850 = vmatpush1.msra.mxu0 0.0
          %851 = vmatprep.subr.mxu0 0.0
          %852 = vmatpush1.msra.mxu0 0.0
          %853 = vmatprep.subr.mxu0 0.0
          %854 = vmatpush1.msra.mxu0 0.0
          %855 = vmatprep.subr.mxu0 0.0
          %856 = vmatpush1.msra.mxu0 0.0
          %857 = vmatprep.subr.mxu0 0.0
          %858 = vmatpush1.msra.mxu0 0.0
          %859 = vmatprep.subr.mxu0 0.0
          %860 = vmatpush1.msra.mxu0 0.0
          %861 = vmatprep.subr.mxu0 0.0
          %862 = vmatpush1.msra.mxu0 0.0
          %863 = vmatprep.subr.mxu0 0.0
          %864 = vmatpush1.msra.mxu0 0.0
          %865 = vmatprep.subr.mxu0 0.0
          %866 = vmatpush1.msra.mxu0 0.0
          %867 = vmatprep.subr.mxu0 0.0
          %868 = vmatpush1.msra.mxu0 0.0
          %869 = vmatprep.subr.mxu0 0.0
          %870 = vmatpush1.msra.mxu0 0.0
          %871 = vmatprep.subr.mxu0 0.0
          %872 = vmatpush1.msra.mxu0 0.0
          %873 = vmatprep.subr.mxu0 0.0
          %874 = vmatpush1.msra.mxu0 0.0
          %875 = vmatprep.subr.mxu0 0.0
          %876 = vmatpush1.msra.mxu0 0.0
          %877 = vmatprep.subr.mxu0 0.0
          %878 = vmatpush1.msra.mxu0 0.0
          %879 = vmatprep.subr.mxu0 0.0
          %880 = vmatpush1.msra.mxu0 0.0
          %881 = vmatprep.subr.mxu0 0.0
          %882 = vmatpush1.msra.mxu0 0.0
          %883 = vmatprep.mubr.f32.mxu0 0.0
          %884 = vmatmul.mubr.f32.gmra.mrb[0].mxu0 %v814
          %v885 = vpop.f32.mrb[0].mxu0
          %v886 = vadd.f32 0.0, %v885
          %v887 = vpop.f32.mrb[0].mxu0
          %888 = vmatprep.mubr.f32.mxu0 0.0
          %889 = vmatmul.mubr.f32.gmra.mrb[0].mxu0 %v817
          %v890 = vpop.f32.mrb[0].mxu0
          %v891 = vadd.f32 0.0, %v890
          %v892 = vpop.f32.mrb[0].mxu0
          %893 = vdwg.mxu0
          %vm894 = vcmask 31744
          %v896 = vsel %vm894, %v803, 0
          %v899 = vsel %vm894, %v808, 0
          %vm901 = vcmask 1043456
          %v903 = vsel %vm901, %v716, 0
          %905 = vmatprep.subr.mxu0 0.0
          %906 = vmatpush1.msra.mxu0 %v903
          %907 = vmatprep.subr.mxu0 0.0
          %908 = vmatpush1.msra.mxu0 0.0
          %909 = vmatprep.subr.mxu0 0.0
          %910 = vmatpush1.msra.mxu0 0.0
          %911 = vmatprep.subr.mxu0 0.0
          %912 = vmatpush1.msra.mxu0 0.0
          %913 = vmatprep.subr.mxu0 0.0
          %914 = vmatpush1.msra.mxu0 0.0
          %915 = vmatprep.subr.mxu0 0.0
          %916 = vmatpush1.msra.mxu0 0.0
          %917 = vmatprep.subr.mxu0 0.0
          %918 = vmatpush1.msra.mxu0 0.0
          %919 = vmatprep.subr.mxu0 0.0
          %920 = vmatpush1.msra.mxu0 0.0
          %921 = vmatprep.subr.mxu0 0.0
          %922 = vmatpush1.msra.mxu0 0.0
          %923 = vmatprep.subr.mxu0 0.0
          %924 = vmatpush1.msra.mxu0 0.0
          %925 = vmatprep.subr.mxu0 0.0
          %926 = vmatpush1.msra.mxu0 0.0
          %927 = vmatprep.subr.mxu0 0.0
          %928 = vmatpush1.msra.mxu0 0.0
          %929 = vmatprep.subr.mxu0 0.0
          %930 = vmatpush1.msra.mxu0 0.0
          %931 = vmatprep.subr.mxu0 0.0
          %932 = vmatpush1.msra.mxu0 0.0
          %933 = vmatprep.subr.mxu0 0.0
          %934 = vmatpush1.msra.mxu0 0.0
          %935 = vmatprep.subr.mxu0 0.0
          %936 = vmatpush1.msra.mxu0 0.0
          %937 = vmatprep.subr.mxu0 0.0
          %938 = vmatpush1.msra.mxu0 0.0
          %939 = vmatprep.subr.mxu0 0.0
          %940 = vmatpush1.msra.mxu0 0.0
          %941 = vmatprep.subr.mxu0 0.0
          %942 = vmatpush1.msra.mxu0 0.0
          %943 = vmatprep.subr.mxu0 0.0
          %944 = vmatpush1.msra.mxu0 0.0
          %945 = vmatprep.subr.mxu0 0.0
          %946 = vmatpush1.msra.mxu0 0.0
          %947 = vmatprep.subr.mxu0 0.0
          %948 = vmatpush1.msra.mxu0 0.0
          %949 = vmatprep.subr.mxu0 0.0
          %950 = vmatpush1.msra.mxu0 0.0
          %951 = vmatprep.subr.mxu0 0.0
          %952 = vmatpush1.msra.mxu0 0.0
          %953 = vmatprep.subr.mxu0 0.0
          %954 = vmatpush1.msra.mxu0 0.0
          %955 = vmatprep.subr.mxu0 0.0
          %956 = vmatpush1.msra.mxu0 0.0
          %957 = vmatprep.subr.mxu0 0.0
          %958 = vmatpush1.msra.mxu0 0.0
          %959 = vmatprep.subr.mxu0 0.0
          %960 = vmatpush1.msra.mxu0 0.0
          %961 = vmatprep.subr.mxu0 0.0
          %962 = vmatpush1.msra.mxu0 0.0
          %963 = vmatprep.subr.mxu0 0.0
          %964 = vmatpush1.msra.mxu0 0.0
          %965 = vmatprep.subr.mxu0 0.0
          %966 = vmatpush1.msra.mxu0 0.0
          %967 = vmatprep.subr.mxu0 0.0
          %968 = vmatpush1.msra.mxu0 0.0
          %969 = vmatprep.mubr.f32.mxu0 0.0
          %970 = vmatmul.mubr.f32.gmra.mrb[0].mxu0 %v896
          %v971 = vpop.f32.mrb[0].mxu0
          %v972 = vadd.f32 0.0, %v971
          %v973 = vpop.f32.mrb[0].mxu0
          %974 = vmatprep.mubr.f32.mxu0 0.0
          %975 = vmatmul.mubr.f32.gmra.mrb[0].mxu0 %v899
          %v976 = vpop.f32.mrb[0].mxu0
          %v977 = vadd.f32 0.0, %v976
          %v978 = vpop.f32.mrb[0].mxu0
          %979 = vdwg.mxu0
          %v981 = vsel %vm894, %v886, 0
          %v984 = vsel %vm894, %v891, 0
          %986 = vmatprep.subr.mxu0 0.0
          %987 = vmatpush1.msra.mxu0 %v903
          %988 = vmatprep.subr.mxu0 0.0
          %989 = vmatpush1.msra.mxu0 0.0
          %990 = vmatprep.subr.mxu0 0.0
          %991 = vmatpush1.msra.mxu0 0.0
          %992 = vmatprep.subr.mxu0 0.0
          %993 = vmatpush1.msra.mxu0 0.0
          %994 = vmatprep.subr.mxu0 0.0
          %995 = vmatpush1.msra.mxu0 0.0
          %996 = vmatprep.subr.mxu0 0.0
          %997 = vmatpush1.msra.mxu0 0.0
          %998 = vmatprep.subr.mxu0 0.0
          %999 = vmatpush1.msra.mxu0 0.0
          %1000 = vmatprep.subr.mxu0 0.0
          %1001 = vmatpush1.msra.mxu0 0.0
          %1002 = vmatprep.subr.mxu0 0.0
          %1003 = vmatpush1.msra.mxu0 0.0
          %1004 = vmatprep.subr.mxu0 0.0
          %1005 = vmatpush1.msra.mxu0 0.0
          %1006 = vmatprep.subr.mxu0 0.0
          %1007 = vmatpush1.msra.mxu0 0.0
          %1008 = vmatprep.subr.mxu0 0.0
          %1009 = vmatpush1.msra.mxu0 0.0
          %1010 = vmatprep.subr.mxu0 0.0
          %1011 = vmatpush1.msra.mxu0 0.0
          %1012 = vmatprep.subr.mxu0 0.0
          %1013 = vmatpush1.msra.mxu0 0.0
          %1014 = vmatprep.subr.mxu0 0.0
          %1015 = vmatpush1.msra.mxu0 0.0
          %1016 = vmatprep.subr.mxu0 0.0
          %1017 = vmatpush1.msra.mxu0 0.0
          %1018 = vmatprep.subr.mxu0 0.0
          %1019 = vmatpush1.msra.mxu0 0.0
          %1020 = vmatprep.subr.mxu0 0.0
          %1021 = vmatpush1.msra.mxu0 0.0
          %1022 = vmatprep.subr.mxu0 0.0
          %1023 = vmatpush1.msra.mxu0 0.0
          %1024 = vmatprep.subr.mxu0 0.0
          %1025 = vmatpush1.msra.mxu0 0.0
          %1026 = vmatprep.subr.mxu0 0.0
          %1027 = vmatpush1.msra.mxu0 0.0
          %1028 = vmatprep.subr.mxu0 0.0
          %1029 = vmatpush1.msra.mxu0 0.0
          %1030 = vmatprep.subr.mxu0 0.0
          %1031 = vmatpush1.msra.mxu0 0.0
          %1032 = vmatprep.subr.mxu0 0.0
          %1033 = vmatpush1.msra.mxu0 0.0
          %1034 = vmatprep.subr.mxu0 0.0
          %1035 = vmatpush1.msra.mxu0 0.0
          %1036 = vmatprep.subr.mxu0 0.0
          %1037 = vmatpush1.msra.mxu0 0.0
          %1038 = vmatprep.subr.mxu0 0.0
          %1039 = vmatpush1.msra.mxu0 0.0
          %1040 = vmatprep.subr.mxu0 0.0
          %1041 = vmatpush1.msra.mxu0 0.0
          %1042 = vmatprep.subr.mxu0 0.0
          %1043 = vmatpush1.msra.mxu0 0.0
          %1044 = vmatprep.subr.mxu0 0.0
          %1045 = vmatpush1.msra.mxu0 0.0
          %1046 = vmatprep.subr.mxu0 0.0
          %1047 = vmatpush1.msra.mxu0 0.0
          %1048 = vmatprep.subr.mxu0 0.0
          %1049 = vmatpush1.msra.mxu0 0.0
          %1050 = vmatprep.mubr.f32.mxu0 0.0
          %1051 = vmatmul.mubr.f32.gmra.mrb[0].mxu0 %v981
          %v1052 = vpop.f32.mrb[0].mxu0
          %v1053 = vadd.f32 0.0, %v1052
          %v1054 = vpop.f32.mrb[0].mxu0
          %1055 = vmatprep.mubr.f32.mxu0 0.0
          %1056 = vmatmul.mubr.f32.gmra.mrb[0].mxu0 %v984
          %v1057 = vpop.f32.mrb[0].mxu0
          %v1058 = vadd.f32 0.0, %v1057
          %v1059 = vpop.f32.mrb[0].mxu0
          %1060 = vdwg.mxu0
          %v1061 = vmul.f32 %v972, %v972
          %v1062 = vmul.f32 %v977, %v977
          %v1063 = vsub.f32 %v1053, %v1061
          %v1064 = vsub.f32 %v1058, %v1062
          %v1065 = vadd.f32 %v1063, 1e-05
          %v1066 = vadd.f32 %v1064, 1e-05
          %v1067 = vrsqrt.pop %v1065
          %v1068 = vrsqrt.pop %v1066
          %v1069 = vsub.f32 %v726, %v972
          %v1070 = vsub.f32 %v727, %v977
          %v1072 = vlaneseq
          %v1073 = vshrl.u32 %v1072, 7
          %v1074 = vsub.s32 0, %v1073
          %v1075 = vrot.slane %v728, %v1074
          %v1077 = vmul.f32 %v1067, %v1075
          %v1078 = vmul.f32 %v1068, %v1075
          %v1079 = vmul.f32 %v1069, %v1077
          %v1080 = vmul.f32 %v1070, %v1078
          %v1082 = vlaneseq
          %v1083 = vshrl.u32 %v1082, 7
          %v1084 = vsub.s32 0, %v1083
          %v1085 = vrot.slane %v729, %v1084
          %v1087 = vadd.f32 %v1079, %v1085
          %v1088 = vadd.f32 %v1080, %v1085
          %v1089 = vmax.f32 %v1087, 0.0
          %v1090 = vmax.f32 %v1088, 0.0
          %v1091 = vpack.c.bf16 %v1090, %v1089
          %v1092 = vld [vmem:[#allocation12] sm:$0xf]
          %v1093 = vld [vmem:[#allocation12 + $0x4] sm:$0xf]
          %v1094 = vld [vmem:[#allocation12 + $0x8] sm:$0xf]
          %v1095 = vld [vmem:[#allocation12 + $0xc] sm:$0xf]
          %v1096 = vld [vmem:[#allocation14] sm:$0x1]
          %v1098 = vlaneseq
          %v1099 = vshrl.u32 %v1098, 7
          %v1100 = vsub.s32 0, %v1099
          %v1101 = vrot.slane %v1096, %v1100
          %v1107 = vunpack.c.l.b16 %v1092
          %v1108 = vunpack.c.l.b16 %v1093
          %v1109 = vunpack.c.l.b16 %v1094
          %v1110 = vunpack.c.l.b16 %v1095
          %v1111 = vpack.c.b16 %v1108, %v1107
          %v1112 = vpack.c.b16 %v1110, %v1109
          %v1116 = vsel %vm705, %v1091, 0
          %1118 = vmatprep.subr.bf16.mxu0 0
          %1119 = vmatpush1.bf16.msra.mxu0 %v1111
          %1120 = vmatprep.subr.bf16.mxu0 0
          %1121 = vmatpush1.bf16.msra.mxu0 %v1112
          %1122 = vmatprep.subr.bf16.mxu0 0
          %1123 = vmatpush1.bf16.msra.mxu0 0
          %1124 = vmatprep.subr.bf16.mxu0 0
          %1125 = vmatpush1.bf16.msra.mxu0 0
          %1126 = vmatprep.subr.bf16.mxu0 0
          %1127 = vmatpush1.bf16.msra.mxu0 0
          %1128 = vmatprep.subr.bf16.mxu0 0
          %1129 = vmatpush1.bf16.msra.mxu0 0
          %1130 = vmatprep.subr.bf16.mxu0 0
          %1131 = vmatpush1.bf16.msra.mxu0 0
          %1132 = vmatprep.subr.bf16.mxu0 0
          %1133 = vmatpush1.bf16.msra.mxu0 0
          %1134 = vmatprep.subr.bf16.mxu0 0
          %1135 = vmatpush1.bf16.msra.mxu0 0
          %1136 = vmatprep.subr.bf16.mxu0 0
          %1137 = vmatpush1.bf16.msra.mxu0 0
          %1138 = vmatprep.subr.bf16.mxu0 0
          %1139 = vmatpush1.bf16.msra.mxu0 0
          %1140 = vmatprep.subr.bf16.mxu0 0
          %1141 = vmatpush1.bf16.msra.mxu0 0
          %1142 = vmatprep.subr.bf16.mxu0 0
          %1143 = vmatpush1.bf16.msra.mxu0 0
          %1144 = vmatprep.subr.bf16.mxu0 0
          %1145 = vmatpush1.bf16.msra.mxu0 0
          %1146 = vmatprep.subr.bf16.mxu0 0
          %1147 = vmatpush1.bf16.msra.mxu0 0
          %1148 = vmatprep.subr.bf16.mxu0 0
          %1149 = vmatpush1.bf16.msra.mxu0 0
          %1150 = vmatprep.mubr.bf16.mxu0 0
          %1151 = vmatmul.mubr.bf16.gmra.mrb[0].mxu0 %v1116
          %v1152 = vpop.f32.mrb[0].mxu0
          %v1153 = vadd.f32 %v1101, %v1152
          %v1154 = vpop.f32.mrb[0].mxu0
          %v1155 = vpop.f32.mrb[0].mxu0
          %v1156 = vadd.f32 %v1101, %v1155
          %v1157 = vpop.f32.mrb[0].mxu0
          %1158 = vdwg.mxu0
          %v1159 = vld [vmem:[#allocation15] sm:$0x1]
          %v1160 = vld [vmem:[#allocation17] sm:$0x1]
          %v1162 = vsel %vm705, %v1153, 0
          %v1165 = vsel %vm705, %v1156, 0
          %1167 = vmatprep.subr.mxu0 0.0
          %1168 = vmatpush1.msra.mxu0 %v712
          %1169 = vmatprep.subr.mxu0 0.0
          %1170 = vmatpush1.msra.mxu0 %v713
          %1171 = vmatprep.subr.mxu0 0.0
          %1172 = vmatpush1.msra.mxu0 %v714
          %1173 = vmatprep.subr.mxu0 0.0
          %1174 = vmatpush1.msra.mxu0 %v715
          %1175 = vmatprep.subr.mxu0 0.0
          %1176 = vmatpush1.msra.mxu0 0.0
          %1177 = vmatprep.subr.mxu0 0.0
          %1178 = vmatpush1.msra.mxu0 0.0
          %1179 = vmatprep.subr.mxu0 0.0
          %1180 = vmatpush1.msra.mxu0 0.0
          %1181 = vmatprep.subr.mxu0 0.0
          %1182 = vmatpush1.msra.mxu0 0.0
          %1183 = vmatprep.subr.mxu0 0.0
          %1184 = vmatpush1.msra.mxu0 0.0
          %1185 = vmatprep.subr.mxu0 0.0
          %1186 = vmatpush1.msra.mxu0 0.0
          %1187 = vmatprep.subr.mxu0 0.0
          %1188 = vmatpush1.msra.mxu0 0.0
          %1189 = vmatprep.subr.mxu0 0.0
          %1190 = vmatpush1.msra.mxu0 0.0
          %1191 = vmatprep.subr.mxu0 0.0
          %1192 = vmatpush1.msra.mxu0 0.0
          %1193 = vmatprep.subr.mxu0 0.0
          %1194 = vmatpush1.msra.mxu0 0.0
          %1195 = vmatprep.subr.mxu0 0.0
          %1196 = vmatpush1.msra.mxu0 0.0
          %1197 = vmatprep.subr.mxu0 0.0
          %1198 = vmatpush1.msra.mxu0 0.0
          %1199 = vmatprep.subr.mxu0 0.0
          %1200 = vmatpush1.msra.mxu0 0.0
          %1201 = vmatprep.subr.mxu0 0.0
          %1202 = vmatpush1.msra.mxu0 0.0
          %1203 = vmatprep.subr.mxu0 0.0
          %1204 = vmatpush1.msra.mxu0 0.0
          %1205 = vmatprep.subr.mxu0 0.0
          %1206 = vmatpush1.msra.mxu0 0.0
          %1207 = vmatprep.subr.mxu0 0.0
          %1208 = vmatpush1.msra.mxu0 0.0
          %1209 = vmatprep.subr.mxu0 0.0
          %1210 = vmatpush1.msra.mxu0 0.0
          %1211 = vmatprep.subr.mxu0 0.0
          %1212 = vmatpush1.msra.mxu0 0.0
          %1213 = vmatprep.subr.mxu0 0.0
          %1214 = vmatpush1.msra.mxu0 0.0
          %1215 = vmatprep.subr.mxu0 0.0
          %1216 = vmatpush1.msra.mxu0 0.0
          %1217 = vmatprep.subr.mxu0 0.0
          %1218 = vmatpush1.msra.mxu0 0.0
          %1219 = vmatprep.subr.mxu0 0.0
          %1220 = vmatpush1.msra.mxu0 0.0
          %1221 = vmatprep.subr.mxu0 0.0
          %1222 = vmatpush1.msra.mxu0 0.0
          %1223 = vmatprep.subr.mxu0 0.0
          %1224 = vmatpush1.msra.mxu0 0.0
          %1225 = vmatprep.subr.mxu0 0.0
          %1226 = vmatpush1.msra.mxu0 0.0
          %1227 = vmatprep.subr.mxu0 0.0
          %1228 = vmatpush1.msra.mxu0 0.0
          %1229 = vmatprep.subr.mxu0 0.0
          %1230 = vmatpush1.msra.mxu0 0.0
          %1231 = vmatprep.mubr.f32.mxu0 0.0
          %1232 = vmatmul.mubr.f32.gmra.mrb[0].mxu0 %v1162
          %v1233 = vpop.f32.mrb[0].mxu0
          %v1234 = vadd.f32 0.0, %v1233
          %v1235 = vpop.f32.mrb[0].mxu0
          %1236 = vmatprep.mubr.f32.mxu0 0.0
          %1237 = vmatmul.mubr.f32.gmra.mrb[0].mxu0 %v1165
          %v1238 = vpop.f32.mrb[0].mxu0
          %v1239 = vadd.f32 0.0, %v1238
          %v1240 = vpop.f32.mrb[0].mxu0
          %1241 = vdwg.mxu0
          %v1242 = vmul.f32 %v1153, %v1153
          %v1243 = vmul.f32 %v1156, %v1156
          %v1245 = vsel %vm705, %v1242, 0
          %v1248 = vsel %vm705, %v1243, 0
          %1250 = vmatprep.subr.mxu0 0.0
          %1251 = vmatpush1.msra.mxu0 %v712
          %1252 = vmatprep.subr.mxu0 0.0
          %1253 = vmatpush1.msra.mxu0 %v713
          %1254 = vmatprep.subr.mxu0 0.0
          %1255 = vmatpush1.msra.mxu0 %v714
          %1256 = vmatprep.subr.mxu0 0.0
          %1257 = vmatpush1.msra.mxu0 %v715
          %1258 = vmatprep.subr.mxu0 0.0
          %1259 = vmatpush1.msra.mxu0 0.0
          %1260 = vmatprep.subr.mxu0 0.0
          %1261 = vmatpush1.msra.mxu0 0.0
          %1262 = vmatprep.subr.mxu0 0.0
          %1263 = vmatpush1.msra.mxu0 0.0
          %1264 = vmatprep.subr.mxu0 0.0
          %1265 = vmatpush1.msra.mxu0 0.0
          %1266 = vmatprep.subr.mxu0 0.0
          %1267 = vmatpush1.msra.mxu0 0.0
          %1268 = vmatprep.subr.mxu0 0.0
          %1269 = vmatpush1.msra.mxu0 0.0
          %1270 = vmatprep.subr.mxu0 0.0
          %1271 = vmatpush1.msra.mxu0 0.0
          %1272 = vmatprep.subr.mxu0 0.0
          %1273 = vmatpush1.msra.mxu0 0.0
          %1274 = vmatprep.subr.mxu0 0.0
          %1275 = vmatpush1.msra.mxu0 0.0
          %1276 = vmatprep.subr.mxu0 0.0
          %1277 = vmatpush1.msra.mxu0 0.0
          %1278 = vmatprep.subr.mxu0 0.0
          %1279 = vmatpush1.msra.mxu0 0.0
          %1280 = vmatprep.subr.mxu0 0.0
          %1281 = vmatpush1.msra.mxu0 0.0
          %1282 = vmatprep.subr.mxu0 0.0
          %1283 = vmatpush1.msra.mxu0 0.0
          %1284 = vmatprep.subr.mxu0 0.0
          %1285 = vmatpush1.msra.mxu0 0.0
          %1286 = vmatprep.subr.mxu0 0.0
          %1287 = vmatpush1.msra.mxu0 0.0
          %1288 = vmatprep.subr.mxu0 0.0
          %1289 = vmatpush1.msra.mxu0 0.0
          %1290 = vmatprep.subr.mxu0 0.0
          %1291 = vmatpush1.msra.mxu0 0.0
          %1292 = vmatprep.subr.mxu0 0.0
          %1293 = vmatpush1.msra.mxu0 0.0
          %1294 = vmatprep.subr.mxu0 0.0
          %1295 = vmatpush1.msra.mxu0 0.0
          %1296 = vmatprep.subr.mxu0 0.0
          %1297 = vmatpush1.msra.mxu0 0.0
          %1298 = vmatprep.subr.mxu0 0.0
          %1299 = vmatpush1.msra.mxu0 0.0
          %1300 = vmatprep.subr.mxu0 0.0
          %1301 = vmatpush1.msra.mxu0 0.0
          %1302 = vmatprep.subr.mxu0 0.0
          %1303 = vmatpush1.msra.mxu0 0.0
          %1304 = vmatprep.subr.mxu0 0.0
          %1305 = vmatpush1.msra.mxu0 0.0
          %1306 = vmatprep.subr.mxu0 0.0
          %1307 = vmatpush1.msra.mxu0 0.0
          %1308 = vmatprep.subr.mxu0 0.0
          %1309 = vmatpush1.msra.mxu0 0.0
          %1310 = vmatprep.subr.mxu0 0.0
          %1311 = vmatpush1.msra.mxu0 0.0
          %1312 = vmatprep.subr.mxu0 0.0
          %1313 = vmatpush1.msra.mxu0 0.0
          %1314 = vmatprep.mubr.f32.mxu0 0.0
          %1315 = vmatmul.mubr.f32.gmra.mrb[0].mxu0 %v1245
          %v1316 = vpop.f32.mrb[0].mxu0
          %v1317 = vadd.f32 0.0, %v1316
          %v1318 = vpop.f32.mrb[0].mxu0
          %1319 = vmatprep.mubr.f32.mxu0 0.0
          %1320 = vmatmul.mubr.f32.gmra.mrb[0].mxu0 %v1248
          %v1321 = vpop.f32.mrb[0].mxu0
          %v1322 = vadd.f32 0.0, %v1321
          %v1323 = vpop.f32.mrb[0].mxu0
          %1324 = vdwg.mxu0
          %v1326 = vsel %vm894, %v1234, 0
          %v1329 = vsel %vm894, %v1239, 0
          %1331 = vmatprep.subr.mxu0 0.0
          %1332 = vmatpush1.msra.mxu0 %v903
          %1333 = vmatprep.subr.mxu0 0.0
          %1334 = vmatpush1.msra.mxu0 0.0
          %1335 = vmatprep.subr.mxu0 0.0
          %1336 = vmatpush1.msra.mxu0 0.0
          %1337 = vmatprep.subr.mxu0 0.0
          %1338 = vmatpush1.msra.mxu0 0.0
          %1339 = vmatprep.subr.mxu0 0.0
          %1340 = vmatpush1.msra.mxu0 0.0
          %1341 = vmatprep.subr.mxu0 0.0
          %1342 = vmatpush1.msra.mxu0 0.0
          %1343 = vmatprep.subr.mxu0 0.0
          %1344 = vmatpush1.msra.mxu0 0.0
          %1345 = vmatprep.subr.mxu0 0.0
          %1346 = vmatpush1.msra.mxu0 0.0
          %1347 = vmatprep.subr.mxu0 0.0
          %1348 = vmatpush1.msra.mxu0 0.0
          %1349 = vmatprep.subr.mxu0 0.0
          %1350 = vmatpush1.msra.mxu0 0.0
          %1351 = vmatprep.subr.mxu0 0.0
          %1352 = vmatpush1.msra.mxu0 0.0
          %1353 = vmatprep.subr.mxu0 0.0
          %1354 = vmatpush1.msra.mxu0 0.0
          %1355 = vmatprep.subr.mxu0 0.0
          %1356 = vmatpush1.msra.mxu0 0.0
          %1357 = vmatprep.subr.mxu0 0.0
          %1358 = vmatpush1.msra.mxu0 0.0
          %1359 = vmatprep.subr.mxu0 0.0
          %1360 = vmatpush1.msra.mxu0 0.0
          %1361 = vmatprep.subr.mxu0 0.0
          %1362 = vmatpush1.msra.mxu0 0.0
          %1363 = vmatprep.subr.mxu0 0.0
          %1364 = vmatpush1.msra.mxu0 0.0
          %1365 = vmatprep.subr.mxu0 0.0
          %1366 = vmatpush1.msra.mxu0 0.0
          %1367 = vmatprep.subr.mxu0 0.0
          %1368 = vmatpush1.msra.mxu0 0.0
          %1369 = vmatprep.subr.mxu0 0.0
          %1370 = vmatpush1.msra.mxu0 0.0
          %1371 = vmatprep.subr.mxu0 0.0
          %1372 = vmatpush1.msra.mxu0 0.0
          %1373 = vmatprep.subr.mxu0 0.0
          %1374 = vmatpush1.msra.mxu0 0.0
          %1375 = vmatprep.subr.mxu0 0.0
          %1376 = vmatpush1.msra.mxu0 0.0
          %1377 = vmatprep.subr.mxu0 0.0
          %1378 = vmatpush1.msra.mxu0 0.0
          %1379 = vmatprep.subr.mxu0 0.0
          %1380 = vmatpush1.msra.mxu0 0.0
          %1381 = vmatprep.subr.mxu0 0.0
          %1382 = vmatpush1.msra.mxu0 0.0
          %1383 = vmatprep.subr.mxu0 0.0
          %1384 = vmatpush1.msra.mxu0 0.0
          %1385 = vmatprep.subr.mxu0 0.0
          %1386 = vmatpush1.msra.mxu0 0.0
          %1387 = vmatprep.subr.mxu0 0.0
          %1388 = vmatpush1.msra.mxu0 0.0
          %1389 = vmatprep.subr.mxu0 0.0
          %1390 = vmatpush1.msra.mxu0 0.0
          %1391 = vmatprep.subr.mxu0 0.0
          %1392 = vmatpush1.msra.mxu0 0.0
          %1393 = vmatprep.subr.mxu0 0.0
          %1394 = vmatpush1.msra.mxu0 0.0
          %1395 = vmatprep.mubr.f32.mxu0 0.0
          %1396 = vmatmul.mubr.f32.gmra.mrb[0].mxu0 %v1326
          %v1397 = vpop.f32.mrb[0].mxu0
          %v1398 = vadd.f32 0.0, %v1397
          %v1399 = vpop.f32.mrb[0].mxu0
          %1400 = vmatprep.mubr.f32.mxu0 0.0
          %1401 = vmatmul.mubr.f32.gmra.mrb[0].mxu0 %v1329
          %v1402 = vpop.f32.mrb[0].mxu0
          %v1403 = vadd.f32 0.0, %v1402
          %v1404 = vpop.f32.mrb[0].mxu0
          %1405 = vdwg.mxu0
          %v1407 = vsel %vm894, %v1317, 0
          %v1410 = vsel %vm894, %v1322, 0
          %1412 = vmatprep.subr.mxu0 0.0
          %1413 = vmatpush1.msra.mxu0 %v903
          %1414 = vmatprep.subr.mxu0 0.0
          %1415 = vmatpush1.msra.mxu0 0.0
          %1416 = vmatprep.subr.mxu0 0.0
          %1417 = vmatpush1.msra.mxu0 0.0
          %1418 = vmatprep.subr.mxu0 0.0
          %1419 = vmatpush1.msra.mxu0 0.0
          %1420 = vmatprep.subr.mxu0 0.0
          %1421 = vmatpush1.msra.mxu0 0.0
          %1422 = vmatprep.subr.mxu0 0.0
          %1423 = vmatpush1.msra.mxu0 0.0
          %1424 = vmatprep.subr.mxu0 0.0
          %1425 = vmatpush1.msra.mxu0 0.0
          %1426 = vmatprep.subr.mxu0 0.0
          %1427 = vmatpush1.msra.mxu0 0.0
          %1428 = vmatprep.subr.mxu0 0.0
          %1429 = vmatpush1.msra.mxu0 0.0
          %1430 = vmatprep.subr.mxu0 0.0
          %1431 = vmatpush1.msra.mxu0 0.0
          %1432 = vmatprep.subr.mxu0 0.0
          %1433 = vmatpush1.msra.mxu0 0.0
          %1434 = vmatprep.subr.mxu0 0.0
          %1435 = vmatpush1.msra.mxu0 0.0
          %1436 = vmatprep.subr.mxu0 0.0
          %1437 = vmatpush1.msra.mxu0 0.0
          %1438 = vmatprep.subr.mxu0 0.0
          %1439 = vmatpush1.msra.mxu0 0.0
          %1440 = vmatprep.subr.mxu0 0.0
          %1441 = vmatpush1.msra.mxu0 0.0
          %1442 = vmatprep.subr.mxu0 0.0
          %1443 = vmatpush1.msra.mxu0 0.0
          %1444 = vmatprep.subr.mxu0 0.0
          %1445 = vmatpush1.msra.mxu0 0.0
          %1446 = vmatprep.subr.mxu0 0.0
          %1447 = vmatpush1.msra.mxu0 0.0
          %1448 = vmatprep.subr.mxu0 0.0
          %1449 = vmatpush1.msra.mxu0 0.0
          %1450 = vmatprep.subr.mxu0 0.0
          %1451 = vmatpush1.msra.mxu0 0.0
          %1452 = vmatprep.subr.mxu0 0.0
          %1453 = vmatpush1.msra.mxu0 0.0
          %1454 = vmatprep.subr.mxu0 0.0
          %1455 = vmatpush1.msra.mxu0 0.0
          %1456 = vmatprep.subr.mxu0 0.0
          %1457 = vmatpush1.msra.mxu0 0.0
          %1458 = vmatprep.subr.mxu0 0.0
          %1459 = vmatpush1.msra.mxu0 0.0
          %1460 = vmatprep.subr.mxu0 0.0
          %1461 = vmatpush1.msra.mxu0 0.0
          %1462 = vmatprep.subr.mxu0 0.0
          %1463 = vmatpush1.msra.mxu0 0.0
          %1464 = vmatprep.subr.mxu0 0.0
          %1465 = vmatpush1.msra.mxu0 0.0
          %1466 = vmatprep.subr.mxu0 0.0
          %1467 = vmatpush1.msra.mxu0 0.0
          %1468 = vmatprep.subr.mxu0 0.0
          %1469 = vmatpush1.msra.mxu0 0.0
          %1470 = vmatprep.subr.mxu0 0.0
          %1471 = vmatpush1.msra.mxu0 0.0
          %1472 = vmatprep.subr.mxu0 0.0
          %1473 = vmatpush1.msra.mxu0 0.0
          %1474 = vmatprep.subr.mxu0 0.0
          %1475 = vmatpush1.msra.mxu0 0.0
          %1476 = vmatprep.mubr.f32.mxu0 0.0
          %1477 = vmatmul.mubr.f32.gmra.mrb[0].mxu0 %v1407
          %v1478 = vpop.f32.mrb[0].mxu0
          %v1479 = vadd.f32 0.0, %v1478
          %v1480 = vpop.f32.mrb[0].mxu0
          %1481 = vmatprep.mubr.f32.mxu0 0.0
          %1482 = vmatmul.mubr.f32.gmra.mrb[0].mxu0 %v1410
          %v1483 = vpop.f32.mrb[0].mxu0
          %v1484 = vadd.f32 0.0, %v1483
          %v1485 = vpop.f32.mrb[0].mxu0
          %1486 = vdwg.mxu0
          %v1487 = vmul.f32 %v1398, %v1398
          %v1488 = vmul.f32 %v1403, %v1403
          %v1489 = vsub.f32 %v1479, %v1487
          %v1490 = vsub.f32 %v1484, %v1488
          %v1491 = vadd.f32 %v1489, 1e-05
          %v1492 = vadd.f32 %v1490, 1e-05
          %v1493 = vrsqrt.pop %v1491
          %v1494 = vrsqrt.pop %v1492
          %v1495 = vsub.f32 %v1153, %v1398
          %v1496 = vsub.f32 %v1156, %v1403
          %v1498 = vlaneseq
          %v1499 = vshrl.u32 %v1498, 7
          %v1500 = vsub.s32 0, %v1499
          %v1501 = vrot.slane %v1159, %v1500
          %v1503 = vmul.f32 %v1493, %v1501
          %v1504 = vmul.f32 %v1494, %v1501
          %v1505 = vmul.f32 %v1495, %v1503
          %v1506 = vmul.f32 %v1496, %v1504
          %v1508 = vlaneseq
          %v1509 = vshrl.u32 %v1508, 7
          %v1510 = vsub.s32 0, %v1509
          %v1511 = vrot.slane %v1160, %v1510
          %v1513 = vadd.f32 %v1505, %v1511
          %v1514 = vadd.f32 %v1506, %v1511
          %v1515 = vmax.f32 %v1513, 0.0
          %v1516 = vmax.f32 %v1514, 0.0
          %1517 = vst.msk [vmem:[%s576] sm:$0xff] %vm705, %v1515
          %1518 = vst.msk [vmem:[%s576 + $0x8] sm:$0xff] %vm705, %v1516
        $region116: #{roi_2mlp_head_gn_forward.1} parent=63 // pred_fallthru
          _
        %s1519 = sand.u32 %s298, 1
        %s1520 = scalar_lea.sflag [#allocation5], %s1519
        %s1521 = sand.u32 %s298, 1
        %s1522 = smul.addr %s1521, 16
        %s1523 = scalar_lea.vmem [#allocation21], %s1522
        // Predicated region
        $region117: #{roi_2mlp_head_gn_forward.1} parent=63 // pred_check
          %p1524 = pneg %p308
        $region118: #{roi_2mlp_head_gn_forward.1} parent=63 // pred_check_branch
          %1526 = sbr.rel (%p1524) target = $region120
        $region119: #{roi_2mlp_head_gn_forward.1} parent=63 // pred_region
          %s1527 = smul.u32 2, %s39
          %s1529 = ssub.s32 256, 256
          %1530 = vsyncadd %s1520, %s1529
          %s1531 = smul.addr %s1527, 128
          %s1532 = scalar_lea.hbm %s11, %s1531
          %s1533 = sshll.u32 %s1523, 4
          %s1534 = int_to_ptr.vmem [resolvable:$true] %s1533
          %1539 = dma.vmem_to_hbm [thread:$0]  %s1534, 256, %s1532, %s1520, 128, 128, 8
        $region120: #{roi_2mlp_head_gn_forward.1} parent=63 // pred_fallthru
          _
      $region64: #{roi_2mlp_head_gn_forward.1} parent=5 // pred_fallthru
        _
      %p1540 = scmp.le.s32.totalorder 2, %s30
      // Predicated region
      $region121: #{roi_2mlp_head_gn_forward.1} parent=5 // pred_check
        %p1541 = pneg %p1540
      $region122: #{roi_2mlp_head_gn_forward.1} parent=5 // pred_check_branch
        %1543 = sbr.rel (%p1541) target = $region124
      $region123: #{roi_2mlp_head_gn_forward.1} parent=5 // pred_region
        %s1544 = ssub.s32 %s30, 2
        // Predicated region
        $region125: #{roi_2mlp_head_gn_forward.1} parent=123 // pred_check
          %p1545 = pneg %p314
        $region126: #{roi_2mlp_head_gn_forward.1} parent=123 // pred_check_branch
          %1547 = sbr.rel (%p1545) target = $region128
        $region127: #{roi_2mlp_head_gn_forward.1} parent=123 // pred_region
          %s1548 = sand.u32 %s299, 1
          %s1549 = scalar_lea.sflag [#allocation5], %s1548
          %s1550 = sand.u32 %s299, 1
          %s1551 = smul.addr %s1550, 16
          %s1552 = scalar_lea.vmem [#allocation21], %s1551
          %1553 = dma.done %s1549, 256
        $region128: #{roi_2mlp_head_gn_forward.1} parent=123 // pred_fallthru
          _
      $region124: #{roi_2mlp_head_gn_forward.1} parent=5 // pred_fallthru
        _
    $region6: #{roi_2mlp_head_gn_forward.1} parent=1 // loop_footer
      %s34 = sadd.s32 1, %s30
    $region7: #{roi_2mlp_head_gn_forward.1} parent=1 // loop_footer_branch
      %29 = sbr.rel target = $region3
    $region8: #{roi_2mlp_head_gn_forward.1} parent=1 // loop_exit
      _
    %1554 = vsyncpa [#allocation4], 1
    %s1555 = scalar_lea.sflag [#allocation4], 1
    %1556 = vsyncpa %s1555, 1
    %1557 = vsyncpa [#allocation7], 1
    %s1558 = scalar_lea.sflag [#allocation7], 1
    %1559 = vsyncpa %s1558, 1
    %1560 = vsyncpa [#allocation10], 1
    %1561 = vsyncpa [#allocation13], 1
    %1562 = vsyncpa [#allocation16], 1
    %1563 = vsyncpa [#allocation19], 1
    %1564 = vsyncpa [#allocation5], 1
    %s1565 = scalar_lea.sflag [#allocation5], 1
    %1566 = vsyncpa %s1565, 1

</llo_original>
